<compile_context>
chip_gen: v7x
topology: tpu7x:2x2x1
jax: 0.10.0
libtpu: 0.0.40
codegen_flags: <defaults>
</compile_context>

<pallas_src>
import jax
import jax.numpy as jnp
import numpy as np
from jax.experimental import pallas as pl
from jax.experimental.pallas import tpu as pltpu


def tree_encoder_forward(feat_blocks, adj_wide, edge_emb, w_node, b_node,
                         level_offsets, level_counts, matmul_dtype=jnp.bfloat16):
    """Tree propagation on level-major, block-diagonally packed trees.

    feat_blocks : [B, N_PAD, F_PAD] f32   zero-padded node features (initial h);
                                          aliased to the output -- do not reuse after call.
    adj_wide    : [B, N_PAD, T*N_PAD] f32 A[b, dst, t*N_PAD + src] = #edges src->dst, etype t
    edge_emb    : [T, out_feats] f32      edge-type embedding table
    w_node      : [out_feats, out_feats]  nn.Linear weight
    b_node      : [out_feats]             nn.Linear bias
    level_offsets / level_counts : per topological level, row offset / row count of
        that frontier inside every packed block (trace-time Python constants).
    matmul_dtype: MXU operand dtype (bf16 = perf path, f32 = exactness path).
    """
    num_blocks, n_pad, f_pad = feat_blocks.shape
    n_etypes = adj_wide.shape[2] // n_pad
    n_levels = len(level_counts)
    f = w_node.shape[0]

    # Lane-dense, zero-padded parameters.  Pad lanes/rows are zero, so padded
    # feature lanes of h stay exactly zero through the whole recurrence.
    w_t = (jnp.zeros((f_pad, f_pad), jnp.float32).at[:f, :f].set(w_node.T)
           .astype(matmul_dtype))
    bias = jnp.zeros((1, f_pad), jnp.float32).at[0, :f].set(b_node)
    emb = jnp.zeros((n_etypes, f_pad), jnp.float32).at[:, :f].set(edge_emb)
    adj = adj_wide.astype(matmul_dtype)   # small integer counts: exact in bf16

    def kernel(feat_ref, adj_ref, emb_ref, w_t_ref, b_ref, out_ref, hstack_ref):
        # out_ref doubles as the working h buffer (it aliases feat in HBM):
        # no separate VMEM h scratch, no final copy.
        feat = feat_ref[...]
        out_ref[...] = feat

        # Seed the emb-scaled source stack: hstack[t*N_PAD + v, :] = h[v] * emb[t].
        # Rows of not-yet-updated nodes only ever meet zero adjacency columns, but
        # must be finite, so seed everything once from the initial features.
        for t in range(n_etypes):
            hstack_ref[pl.ds(t * n_pad, n_pad), :] = (
                feat * emb_ref[pl.ds(t, 1), :]).astype(matmul_dtype)

        # Fully unrolled level loop; each level touches only its frontier rows.
        for level in range(n_levels):
            off, cnt = level_offsets[level], level_counts[level]
            h_rows = out_ref[pl.ds(off, cnt), :]
            # lin = h @ W^T + b   (MXU, f32 accumulation), frontier rows only.
            acc = jnp.dot(h_rows.astype(matmul_dtype), w_t_ref[...],
                          preferred_element_type=jnp.float32) + b_ref[...]
            if level > 0:
                # agg = sum_t A_t @ (h * emb[t])  ==  one K = T*N_PAD matmul.
                # Level-0 nodes are leaves (zero in-degree): agg == 0, skip.
                acc = acc + jnp.dot(adj_ref[pl.ds(off, cnt), :], hstack_ref[...],
                                    preferred_element_type=jnp.float32)
            h_new = jnp.tanh(acc)
            out_ref[pl.ds(off, cnt), :] = h_new
            if level + 1 < n_levels:
                # Refresh the scaled-source rows for the nodes just computed.
                for t in range(n_etypes):
                    hstack_ref[pl.ds(t * n_pad + off, cnt), :] = (
                        h_new * emb_ref[pl.ds(t, 1), :]).astype(matmul_dtype)

    grid_spec = pltpu.PrefetchScalarGridSpec(
        num_scalar_prefetch=0,
        grid=(num_blocks,),
        in_specs=[
            pl.BlockSpec((None, n_pad, f_pad), lambda b: (b, 0, 0)),
            # Adjacency is the dominant DMA; leave default double-buffering
            # (switch to pipeline_mode=pl.Buffered(3) only if a trace shows it exposed).
            pl.BlockSpec((None, n_pad, n_etypes * n_pad), lambda b: (b, 0, 0)),
            pl.BlockSpec((n_etypes, f_pad), lambda b: (0, 0)),
            pl.BlockSpec((f_pad, f_pad), lambda b: (0, 0)),
            pl.BlockSpec((1, f_pad), lambda b: (0, 0)),
        ],
        out_specs=pl.BlockSpec((None, n_pad, f_pad), lambda b: (b, 0, 0)),
        scratch_shapes=[pltpu.VMEM((n_etypes * n_pad, f_pad), matmul_dtype)],
    )

    return pl.pallas_call(
        kernel,
        grid_spec=grid_spec,
        out_shape=jax.ShapeDtypeStruct((num_blocks, n_pad, f_pad), jnp.float32),
        # h is semantically an in-place update of feat; caller must not reuse feat_blocks.
        input_output_aliases={0: 0},
        compiler_params=pltpu.CompilerParams(dimension_semantics=("parallel",)),
    )(feat_blocks, adj, emb, w_t, bias)


def _topo_levels(n_nodes, src, dst):
    """DGL-style topological frontiers (zero in-degree nodes first) -> node levels."""
    indeg = [0] * n_nodes
    out_edges = [[] for _ in range(n_nodes)]
    for s, d in zip(src, dst):
        indeg[d] += 1
        out_edges[s].append(d)
    level = [0] * n_nodes
    frontier = [v for v in range(n_nodes) if indeg[v] == 0]
    n_levels = 0
    while frontier:
        nxt = []
        for v in frontier:
            level[v] = n_levels
            for d in out_edges[v]:
                indeg[d] -= 1
                if indeg[d] == 0:
                    nxt.append(d)
        frontier = nxt
        n_levels += 1
    return level, n_levels


if __name__ == "__main__":
    key = jax.random.PRNGKey(0)
    in_feats, out_feats, n_etypes = 8, 32, 3

    # One full binary tree with 15 nodes; edges point child -> parent so messages
    # flow leaves -> root under topological propagation.
    N_TREE = 15
    src_list, dst_list = [], []
    for p in range(7):
        for c in (2 * p + 1, 2 * p + 2):
            src_list.append(c)
            dst_list.append(p)
    E = len(src_list)
    levels, n_levels = _topo_levels(N_TREE, src_list, dst_list)

    # A batch of trees (same structure, independent features / edge types).
    n_trees = 16
    k1, k2, k3, k4, k5 = jax.random.split(key, 5)
    w_node = jax.random.normal(k1, (out_feats, out_feats), jnp.float32) * 0.1
    b_node = jax.random.normal(k2, (out_feats,), jnp.float32) * 0.1
    edge_emb = jax.random.normal(k3, (n_etypes, out_feats), jnp.float32) * 0.1
    feats = jax.random.normal(k4, (n_trees, N_TREE, in_feats), jnp.float32)
    etypes = jax.random.randint(k5, (n_trees, E), 0, n_etypes)

    # ---- host-side glue: LEVEL-MAJOR packing of 8 trees per 128-row block ----
    F_PAD = 128                        # lane-dense feature axis (out_feats -> 128)
    N_PAD = 128                        # node rows per block (MXU M dim)
    TREES_PER_BLOCK = N_PAD // N_TREE  # 8 trees * 15 nodes -> 120 of 128 rows used
    num_blocks = -(-n_trees // TREES_PER_BLOCK)

    tree_lvl_nodes = [[v for v in range(N_TREE) if levels[v] == l] for l in range(n_levels)]
    tree_lvl_counts = [len(ns) for ns in tree_lvl_nodes]
    level_offsets, level_counts = [], []
    seg_off = 0
    for c in tree_lvl_counts:
        blk_c = TREES_PER_BLOCK * c
        level_offsets.append(seg_off)
        level_counts.append(blk_c)                 # 64 / 32 / 16 / 8 rows per frontier
        seg_off += -(-blk_c // 8) * 8              # keep segments sublane (8-row) aligned
    assert seg_off <= N_PAD

    def node_row(slot, v):
        l = levels[v]
        return (level_offsets[l] + slot * tree_lvl_counts[l]
                + tree_lvl_nodes[l].index(v))

    feat_np = np.zeros((num_blocks, N_PAD, F_PAD), np.float32)
    adj_np = np.zeros((num_blocks, N_PAD, n_etypes * N_PAD), np.float32)
    rows = np.zeros((n_trees, N_TREE), np.int32)
    feats_np = np.asarray(feats)
    etypes_np = np.asarray(etypes)
    for ti in range(n_trees):
        blk, slot = divmod(ti, TREES_PER_BLOCK)
        for v in range(N_TREE):
            r = node_row(slot, v)
            rows[ti, v] = r
            feat_np[blk, r, :in_feats] = feats_np[ti, v]
        for e in range(E):
            s, d, t = src_list[e], dst_list[e], int(etypes_np[ti, e])
            adj_np[blk, node_row(slot, d), t * N_PAD + node_row(slot, s)] += 1.0  # multigraph sum

    adj_j = jnp.asarray(adj_np)

    # ---- Pallas kernel: bf16 MXU operands (perf path) + f32 operands (exactness) ----
    h_bf16 = jax.block_until_ready(tree_encoder_forward(
        jnp.asarray(feat_np), adj_j, edge_emb, w_node, b_node,
        level_offsets, level_counts, matmul_dtype=jnp.bfloat16))
    h_f32 = jax.block_until_ready(tree_encoder_forward(
        jnp.asarray(feat_np), adj_j, edge_emb, w_node, b_node,
        level_offsets, level_counts, matmul_dtype=jnp.float32))

    # ---- pure-JAX reference (per tree, unpacked / unpadded) ----
    src_arr = jnp.asarray(src_list)
    dst_arr = jnp.asarray(dst_list)
    lvl_arr = jnp.asarray(levels)
    hi = jax.lax.Precision.HIGHEST
    err_bf16 = err_f32 = 0.0
    for ti in range(n_trees):
        h = jnp.concatenate(
            [feats[ti], jnp.zeros((N_TREE, out_feats - in_feats), jnp.float32)], axis=-1)
        adj_e = jnp.zeros((N_TREE, N_TREE, out_feats), jnp.float32).at[
            dst_arr, src_arr].add(edge_emb[etypes[ti]])
        for l in range(n_levels):
            agg = jnp.einsum("dsf,sf->df", adj_e, h, precision=hi)
            h_new = jnp.tanh(jnp.dot(h, w_node.T, precision=hi) + b_node + agg)
            h = jnp.where((lvl_arr == l)[:, None], h_new, h)
        blk = ti // TREES_PER_BLOCK
        got_bf = h_bf16[blk, rows[ti], :out_feats]
        got_f32 = h_f32[blk, rows[ti], :out_feats]
        err_bf16 = max(err_bf16, float(jnp.max(jnp.abs(got_bf - h))))
        err_f32 = max(err_f32, float(jnp.max(jnp.abs(got_f32 - h))))

    assert h_bf16.shape == (num_blocks, N_PAD, F_PAD)
    assert h_f32.shape == (num_blocks, N_PAD, F_PAD)
    # f32-operand path pins algorithmic exactness; bf16 path tolerance reflects
    # bf16 MXU operand rounding through a 4-level tanh recurrence (review caveat).
    assert err_f32 < 1e-4, f"f32 path max err {err_f32}"
    assert err_bf16 < 5e-2, f"bf16 path max err {err_bf16}"
    print("KERNEL_OK")
</pallas_src>

<mosaic_0001>
module attributes {stable_mosaic.version = 11 : i64} {
  func.func @kernel(%arg0: i32, %arg1: memref<1x128x128xf32, #tpu.memory_space<vmem>>, %arg2: memref<1x128x384xbf16, #tpu.memory_space<vmem>>, %arg3: memref<3x128xf32, #tpu.memory_space<vmem>>, %arg4: memref<128x128xbf16, #tpu.memory_space<vmem>>, %arg5: memref<1x128xf32, #tpu.memory_space<vmem>>, %arg6: memref<1x128x128xf32, #tpu.memory_space<vmem>>, %arg7: memref<384x128xbf16, #tpu.memory_space<vmem>>) attributes {dimension_semantics = [#tpu.dimension_semantics<parallel>], iteration_bounds = array<i64: 2>, scalar_prefetch = 0 : i64, scratch_operands = 1 : i64, tpu.core_type = #tpu.core_type<tc>, window_params = [{transform_indices = @transform_0, window_bounds = array<i64: 1, 128, 128>}, {transform_indices = @transform_1, window_bounds = array<i64: 1, 128, 384>}, {pipeline_mode = #tpu.pipeline_mode<synchronous>, transform_indices = @transform_2, window_bounds = array<i64: 3, 128>}, {pipeline_mode = #tpu.pipeline_mode<synchronous>, transform_indices = @transform_3, window_bounds = array<i64: 128, 128>}, {pipeline_mode = #tpu.pipeline_mode<synchronous>, transform_indices = @transform_4, window_bounds = array<i64: 1, 128>}, {transform_indices = @transform_5, window_bounds = array<i64: 1, 128, 128>}]} {
    %c0 = arith.constant 0 : index
    %c0_0 = arith.constant 0 : index
    %c0_1 = arith.constant 0 : index
    %0 = vector.load %arg1[%c0, %c0_0, %c0_1] : memref<1x128x128xf32, #tpu.memory_space<vmem>>, vector<1x128x128xf32>
    %1 = vector.shape_cast %0 : vector<1x128x128xf32> to vector<128x128xf32>
    %c0_2 = arith.constant 0 : index
    %c0_3 = arith.constant 0 : index
    %c0_4 = arith.constant 0 : index
    %2 = vector.load %arg6[%c0_2, %c0_3, %c0_4] : memref<1x128x128xf32, #tpu.memory_space<vmem>>, vector<1x128x128xf32>
    %3 = vector.shape_cast %2 : vector<1x128x128xf32> to vector<128x128xf32>
    %4 = vector.shape_cast %1 : vector<128x128xf32> to vector<1x128x128xf32>
    tpu.vector_store %arg6[%c0_2, %c0_3, %c0_4], %4 {strides = array<i32>} : memref<1x128x128xf32, #tpu.memory_space<vmem>>, vector<1x128x128xf32>,
    %c0_5 = arith.constant 0 : index
    %c0_6 = arith.constant 0 : index
    %5 = vector.load %arg3[%c0_5, %c0_6] : memref<3x128xf32, #tpu.memory_space<vmem>>, vector<1x128xf32>
    %6 = vector.broadcast %5 : vector<1x128xf32> to vector<128x128xf32>
    %7 = arith.mulf %1, %6 : vector<128x128xf32>
    %8 = arith.truncf %7 : vector<128x128xf32> to vector<128x128xbf16>
    %c0_7 = arith.constant 0 : index
    %c0_8 = arith.constant 0 : index
    %9 = vector.load %arg7[%c0_7, %c0_8] : memref<384x128xbf16, #tpu.memory_space<vmem>>, vector<128x128xbf16>
    tpu.vector_store %arg7[%c0_7, %c0_8], %8 {strides = array<i32>} : memref<384x128xbf16, #tpu.memory_space<vmem>>, vector<128x128xbf16>,
    %c1 = arith.constant 1 : index
    %c0_9 = arith.constant 0 : index
    %10 = vector.load %arg3[%c1, %c0_9] : memref<3x128xf32, #tpu.memory_space<vmem>>, vector<1x128xf32>
    %11 = vector.broadcast %10 : vector<1x128xf32> to vector<128x128xf32>
    %12 = arith.mulf %1, %11 : vector<128x128xf32>
    %13 = arith.truncf %12 : vector<128x128xf32> to vector<128x128xbf16>
    %c128 = arith.constant 128 : index
    %c0_10 = arith.constant 0 : index
    %14 = vector.load %arg7[%c128, %c0_10] : memref<384x128xbf16, #tpu.memory_space<vmem>>, vector<128x128xbf16>
    tpu.vector_store %arg7[%c128, %c0_10], %13 {strides = array<i32>} : memref<384x128xbf16, #tpu.memory_space<vmem>>, vector<128x128xbf16>,
    %c2 = arith.constant 2 : index
    %c0_11 = arith.constant 0 : index
    %15 = vector.load %arg3[%c2, %c0_11] : memref<3x128xf32, #tpu.memory_space<vmem>>, vector<1x128xf32>
    %16 = vector.broadcast %15 : vector<1x128xf32> to vector<128x128xf32>
    %17 = arith.mulf %1, %16 : vector<128x128xf32>
    %18 = arith.truncf %17 : vector<128x128xf32> to vector<128x128xbf16>
    %c256 = arith.constant 256 : index
    %c0_12 = arith.constant 0 : index
    %19 = vector.load %arg7[%c256, %c0_12] : memref<384x128xbf16, #tpu.memory_space<vmem>>, vector<128x128xbf16>
    tpu.vector_store %arg7[%c256, %c0_12], %18 {strides = array<i32>} : memref<384x128xbf16, #tpu.memory_space<vmem>>, vector<128x128xbf16>,
    %c0_13 = arith.constant 0 : index
    %c0_14 = arith.constant 0 : index
    %c0_15 = arith.constant 0 : index
    %20 = vector.load %arg6[%c0_13, %c0_14, %c0_15] : memref<1x128x128xf32, #tpu.memory_space<vmem>>, vector<1x64x128xf32>
    %21 = vector.shape_cast %20 : vector<1x64x128xf32> to vector<64x128xf32>
    %22 = arith.truncf %21 : vector<64x128xf32> to vector<64x128xbf16>
    %c0_16 = arith.constant 0 : index
    %c0_17 = arith.constant 0 : index
    %23 = vector.load %arg4[%c0_16, %c0_17] : memref<128x128xbf16, #tpu.memory_space<vmem>>, vector<128x128xbf16>
    %cst = arith.constant dense<0.000000e+00> : vector<64x128xf32>
    %24 = tpu.matmul %22, %23, %cst {dimension_numbers = #tpu.dot_dimension_numbers<[1], [0], [0], [1], [0, 0, 1, 1], [], []>} : vector<64x128xbf16>, vector<128x128xbf16>, vector<64x128xf32> -> vector<64x128xf32>
    %c0_18 = arith.constant 0 : index
    %c0_19 = arith.constant 0 : index
    %25 = vector.load %arg5[%c0_18, %c0_19] : memref<1x128xf32, #tpu.memory_space<vmem>>, vector<1x128xf32>
    %26 = vector.broadcast %25 : vector<1x128xf32> to vector<64x128xf32>
    %27 = arith.addf %24, %26 : vector<64x128xf32>
    %28 = math.tanh %27 : vector<64x128xf32>
    %c0_20 = arith.constant 0 : index
    %c0_21 = arith.constant 0 : index
    %c0_22 = arith.constant 0 : index
    %29 = vector.load %arg6[%c0_20, %c0_21, %c0_22] : memref<1x128x128xf32, #tpu.memory_space<vmem>>, vector<1x64x128xf32>
    %30 = vector.shape_cast %29 : vector<1x64x128xf32> to vector<64x128xf32>
    %31 = vector.shape_cast %28 : vector<64x128xf32> to vector<1x64x128xf32>
    tpu.vector_store %arg6[%c0_20, %c0_21, %c0_22], %31 {strides = array<i32>} : memref<1x128x128xf32, #tpu.memory_space<vmem>>, vector<1x64x128xf32>,
    %c0_23 = arith.constant 0 : index
    %c0_24 = arith.constant 0 : index
    %32 = vector.load %arg3[%c0_23, %c0_24] : memref<3x128xf32, #tpu.memory_space<vmem>>, vector<1x128xf32>
    %33 = vector.broadcast %32 : vector<1x128xf32> to vector<64x128xf32>
    %34 = arith.mulf %28, %33 : vector<64x128xf32>
    %35 = arith.truncf %34 : vector<64x128xf32> to vector<64x128xbf16>
    %c0_25 = arith.constant 0 : index
    %c0_26 = arith.constant 0 : index
    %36 = vector.load %arg7[%c0_25, %c0_26] : memref<384x128xbf16, #tpu.memory_space<vmem>>, vector<64x128xbf16>
    tpu.vector_store %arg7[%c0_25, %c0_26], %35 {strides = array<i32>} : memref<384x128xbf16, #tpu.memory_space<vmem>>, vector<64x128xbf16>,
    %c1_27 = arith.constant 1 : index
    %c0_28 = arith.constant 0 : index
    %37 = vector.load %arg3[%c1_27, %c0_28] : memref<3x128xf32, #tpu.memory_space<vmem>>, vector<1x128xf32>
    %38 = vector.broadcast %37 : vector<1x128xf32> to vector<64x128xf32>
    %39 = arith.mulf %28, %38 : vector<64x128xf32>
    %40 = arith.truncf %39 : vector<64x128xf32> to vector<64x128xbf16>
    %c128_29 = arith.constant 128 : index
    %c0_30 = arith.constant 0 : index
    %41 = vector.load %arg7[%c128_29, %c0_30] : memref<384x128xbf16, #tpu.memory_space<vmem>>, vector<64x128xbf16>
    tpu.vector_store %arg7[%c128_29, %c0_30], %40 {strides = array<i32>} : memref<384x128xbf16, #tpu.memory_space<vmem>>, vector<64x128xbf16>,
    %c2_31 = arith.constant 2 : index
    %c0_32 = arith.constant 0 : index
    %42 = vector.load %arg3[%c2_31, %c0_32] : memref<3x128xf32, #tpu.memory_space<vmem>>, vector<1x128xf32>
    %43 = vector.broadcast %42 : vector<1x128xf32> to vector<64x128xf32>
    %44 = arith.mulf %28, %43 : vector<64x128xf32>
    %45 = arith.truncf %44 : vector<64x128xf32> to vector<64x128xbf16>
    %c256_33 = arith.constant 256 : index
    %c0_34 = arith.constant 0 : index
    %46 = vector.load %arg7[%c256_33, %c0_34] : memref<384x128xbf16, #tpu.memory_space<vmem>>, vector<64x128xbf16>
    tpu.vector_store %arg7[%c256_33, %c0_34], %45 {strides = array<i32>} : memref<384x128xbf16, #tpu.memory_space<vmem>>, vector<64x128xbf16>,
    %c0_35 = arith.constant 0 : index
    %c64 = arith.constant 64 : index
    %c0_36 = arith.constant 0 : index
    %47 = vector.load %arg6[%c0_35, %c64, %c0_36] : memref<1x128x128xf32, #tpu.memory_space<vmem>>, vector<1x32x128xf32>
    %48 = vector.shape_cast %47 : vector<1x32x128xf32> to vector<32x128xf32>
    %49 = arith.truncf %48 : vector<32x128xf32> to vector<32x128xbf16>
    %c0_37 = arith.constant 0 : index
    %c0_38 = arith.constant 0 : index
    %50 = vector.load %arg4[%c0_37, %c0_38] : memref<128x128xbf16, #tpu.memory_space<vmem>>, vector<128x128xbf16>
    %cst_39 = arith.constant dense<0.000000e+00> : vector<32x128xf32>
    %51 = tpu.matmul %49, %50, %cst_39 {dimension_numbers = #tpu.dot_dimension_numbers<[1], [0], [0], [1], [0, 0, 1, 1], [], []>} : vector<32x128xbf16>, vector<128x128xbf16>, vector<32x128xf32> -> vector<32x128xf32>
    %c0_40 = arith.constant 0 : index
    %c0_41 = arith.constant 0 : index
    %52 = vector.load %arg5[%c0_40, %c0_41] : memref<1x128xf32, #tpu.memory_space<vmem>>, vector<1x128xf32>
    %53 = vector.broadcast %52 : vector<1x128xf32> to vector<32x128xf32>
    %54 = arith.addf %51, %53 : vector<32x128xf32>
    %c0_42 = arith.constant 0 : index
    %c64_43 = arith.constant 64 : index
    %c0_44 = arith.constant 0 : index
    %55 = vector.load %arg2[%c0_42, %c64_43, %c0_44] : memref<1x128x384xbf16, #tpu.memory_space<vmem>>, vector<1x32x384xbf16>
    %56 = vector.shape_cast %55 : vector<1x32x384xbf16> to vector<32x384xbf16>
    %c0_45 = arith.constant 0 : index
    %c0_46 = arith.constant 0 : index
    %57 = vector.load %arg7[%c0_45, %c0_46] : memref<384x128xbf16, #tpu.memory_space<vmem>>, vector<384x128xbf16>
    %cst_47 = arith.constant dense<0.000000e+00> : vector<32x128xf32>
    %58 = tpu.matmul %56, %57, %cst_47 {dimension_numbers = #tpu.dot_dimension_numbers<[1], [0], [0], [1], [0, 0, 1, 1], [], []>} : vector<32x384xbf16>, vector<384x128xbf16>, vector<32x128xf32> -> vector<32x128xf32>
    %59 = arith.addf %54, %58 : vector<32x128xf32>
    %60 = math.tanh %59 : vector<32x128xf32>
    %c0_48 = arith.constant 0 : index
    %c64_49 = arith.constant 64 : index
    %c0_50 = arith.constant 0 : index
    %61 = vector.load %arg6[%c0_48, %c64_49, %c0_50] : memref<1x128x128xf32, #tpu.memory_space<vmem>>, vector<1x32x128xf32>
    %62 = vector.shape_cast %61 : vector<1x32x128xf32> to vector<32x128xf32>
    %63 = vector.shape_cast %60 : vector<32x128xf32> to vector<1x32x128xf32>
    tpu.vector_store %arg6[%c0_48, %c64_49, %c0_50], %63 {strides = array<i32>} : memref<1x128x128xf32, #tpu.memory_space<vmem>>, vector<1x32x128xf32>,
    %c0_51 = arith.constant 0 : index
    %c0_52 = arith.constant 0 : index
    %64 = vector.load %arg3[%c0_51, %c0_52] : memref<3x128xf32, #tpu.memory_space<vmem>>, vector<1x128xf32>
    %65 = vector.broadcast %64 : vector<1x128xf32> to vector<32x128xf32>
    %66 = arith.mulf %60, %65 : vector<32x128xf32>
    %67 = arith.truncf %66 : vector<32x128xf32> to vector<32x128xbf16>
    %c64_53 = arith.constant 64 : index
    %c0_54 = arith.constant 0 : index
    %68 = vector.load %arg7[%c64_53, %c0_54] : memref<384x128xbf16, #tpu.memory_space<vmem>>, vector<32x128xbf16>
    tpu.vector_store %arg7[%c64_53, %c0_54], %67 {strides = array<i32>} : memref<384x128xbf16, #tpu.memory_space<vmem>>, vector<32x128xbf16>,
    %c1_55 = arith.constant 1 : index
    %c0_56 = arith.constant 0 : index
    %69 = vector.load %arg3[%c1_55, %c0_56] : memref<3x128xf32, #tpu.memory_space<vmem>>, vector<1x128xf32>
    %70 = vector.broadcast %69 : vector<1x128xf32> to vector<32x128xf32>
    %71 = arith.mulf %60, %70 : vector<32x128xf32>
    %72 = arith.truncf %71 : vector<32x128xf32> to vector<32x128xbf16>
    %c192 = arith.constant 192 : index
    %c0_57 = arith.constant 0 : index
    %73 = vector.load %arg7[%c192, %c0_57] : memref<384x128xbf16, #tpu.memory_space<vmem>>, vector<32x128xbf16>
    tpu.vector_store %arg7[%c192, %c0_57], %72 {strides = array<i32>} : memref<384x128xbf16, #tpu.memory_space<vmem>>, vector<32x128xbf16>,
    %c2_58 = arith.constant 2 : index
    %c0_59 = arith.constant 0 : index
    %74 = vector.load %arg3[%c2_58, %c0_59] : memref<3x128xf32, #tpu.memory_space<vmem>>, vector<1x128xf32>
    %75 = vector.broadcast %74 : vector<1x128xf32> to vector<32x128xf32>
    %76 = arith.mulf %60, %75 : vector<32x128xf32>
    %77 = arith.truncf %76 : vector<32x128xf32> to vector<32x128xbf16>
    %c320 = arith.constant 320 : index
    %c0_60 = arith.constant 0 : index
    %78 = vector.load %arg7[%c320, %c0_60] : memref<384x128xbf16, #tpu.memory_space<vmem>>, vector<32x128xbf16>
    tpu.vector_store %arg7[%c320, %c0_60], %77 {strides = array<i32>} : memref<384x128xbf16, #tpu.memory_space<vmem>>, vector<32x128xbf16>,
    %c0_61 = arith.constant 0 : index
    %c96 = arith.constant 96 : index
    %c0_62 = arith.constant 0 : index
    %79 = vector.load %arg6[%c0_61, %c96, %c0_62] : memref<1x128x128xf32, #tpu.memory_space<vmem>>, vector<1x16x128xf32>
    %80 = vector.shape_cast %79 : vector<1x16x128xf32> to vector<16x128xf32>
    %81 = arith.truncf %80 : vector<16x128xf32> to vector<16x128xbf16>
    %c0_63 = arith.constant 0 : index
    %c0_64 = arith.constant 0 : index
    %82 = vector.load %arg4[%c0_63, %c0_64] : memref<128x128xbf16, #tpu.memory_space<vmem>>, vector<128x128xbf16>
    %cst_65 = arith.constant dense<0.000000e+00> : vector<16x128xf32>
    %83 = tpu.matmul %81, %82, %cst_65 {dimension_numbers = #tpu.dot_dimension_numbers<[1], [0], [0], [1], [0, 0, 1, 1], [], []>} : vector<16x128xbf16>, vector<128x128xbf16>, vector<16x128xf32> -> vector<16x128xf32>
    %c0_66 = arith.constant 0 : index
    %c0_67 = arith.constant 0 : index
    %84 = vector.load %arg5[%c0_66, %c0_67] : memref<1x128xf32, #tpu.memory_space<vmem>>, vector<1x128xf32>
    %85 = vector.broadcast %84 : vector<1x128xf32> to vector<16x128xf32>
    %86 = arith.addf %83, %85 : vector<16x128xf32>
    %c0_68 = arith.constant 0 : index
    %c96_69 = arith.constant 96 : index
    %c0_70 = arith.constant 0 : index
    %87 = vector.load %arg2[%c0_68, %c96_69, %c0_70] : memref<1x128x384xbf16, #tpu.memory_space<vmem>>, vector<1x16x384xbf16>
    %88 = vector.shape_cast %87 : vector<1x16x384xbf16> to vector<16x384xbf16>
    %c0_71 = arith.constant 0 : index
    %c0_72 = arith.constant 0 : index
    %89 = vector.load %arg7[%c0_71, %c0_72] : memref<384x128xbf16, #tpu.memory_space<vmem>>, vector<384x128xbf16>
    %cst_73 = arith.constant dense<0.000000e+00> : vector<16x128xf32>
    %90 = tpu.matmul %88, %89, %cst_73 {dimension_numbers = #tpu.dot_dimension_numbers<[1], [0], [0], [1], [0, 0, 1, 1], [], []>} : vector<16x384xbf16>, vector<384x128xbf16>, vector<16x128xf32> -> vector<16x128xf32>
    %91 = arith.addf %86, %90 : vector<16x128xf32>
    %92 = math.tanh %91 : vector<16x128xf32>
    %c0_74 = arith.constant 0 : index
    %c96_75 = arith.constant 96 : index
    %c0_76 = arith.constant 0 : index
    %93 = vector.load %arg6[%c0_74, %c96_75, %c0_76] : memref<1x128x128xf32, #tpu.memory_space<vmem>>, vector<1x16x128xf32>
    %94 = vector.shape_cast %93 : vector<1x16x128xf32> to vector<16x128xf32>
    %95 = vector.shape_cast %92 : vector<16x128xf32> to vector<1x16x128xf32>
    tpu.vector_store %arg6[%c0_74, %c96_75, %c0_76], %95 {strides = array<i32>} : memref<1x128x128xf32, #tpu.memory_space<vmem>>, vector<1x16x128xf32>,
    %c0_77 = arith.constant 0 : index
    %c0_78 = arith.constant 0 : index
    %96 = vector.load %arg3[%c0_77, %c0_78] : memref<3x128xf32, #tpu.memory_space<vmem>>, vector<1x128xf32>
    %97 = vector.broadcast %96 : vector<1x128xf32> to vector<16x128xf32>
    %98 = arith.mulf %92, %97 : vector<16x128xf32>
    %99 = arith.truncf %98 : vector<16x128xf32> to vector<16x128xbf16>
    %c96_79 = arith.constant 96 : index
    %c0_80 = arith.constant 0 : index
    %100 = vector.load %arg7[%c96_79, %c0_80] : memref<384x128xbf16, #tpu.memory_space<vmem>>, vector<16x128xbf16>
    tpu.vector_store %arg7[%c96_79, %c0_80], %99 {strides = array<i32>} : memref<384x128xbf16, #tpu.memory_space<vmem>>, vector<16x128xbf16>,
    %c1_81 = arith.constant 1 : index
    %c0_82 = arith.constant 0 : index
    %101 = vector.load %arg3[%c1_81, %c0_82] : memref<3x128xf32, #tpu.memory_space<vmem>>, vector<1x128xf32>
    %102 = vector.broadcast %101 : vector<1x128xf32> to vector<16x128xf32>
    %103 = arith.mulf %92, %102 : vector<16x128xf32>
    %104 = arith.truncf %103 : vector<16x128xf32> to vector<16x128xbf16>
    %c224 = arith.constant 224 : index
    %c0_83 = arith.constant 0 : index
    %105 = vector.load %arg7[%c224, %c0_83] : memref<384x128xbf16, #tpu.memory_space<vmem>>, vector<16x128xbf16>
    tpu.vector_store %arg7[%c224, %c0_83], %104 {strides = array<i32>} : memref<384x128xbf16, #tpu.memory_space<vmem>>, vector<16x128xbf16>,
    %c2_84 = arith.constant 2 : index
    %c0_85 = arith.constant 0 : index
    %106 = vector.load %arg3[%c2_84, %c0_85] : memref<3x128xf32, #tpu.memory_space<vmem>>, vector<1x128xf32>
    %107 = vector.broadcast %106 : vector<1x128xf32> to vector<16x128xf32>
    %108 = arith.mulf %92, %107 : vector<16x128xf32>
    %109 = arith.truncf %108 : vector<16x128xf32> to vector<16x128xbf16>
    %c352 = arith.constant 352 : index
    %c0_86 = arith.constant 0 : index
    %110 = vector.load %arg7[%c352, %c0_86] : memref<384x128xbf16, #tpu.memory_space<vmem>>, vector<16x128xbf16>
    tpu.vector_store %arg7[%c352, %c0_86], %109 {strides = array<i32>} : memref<384x128xbf16, #tpu.memory_space<vmem>>, vector<16x128xbf16>,
    %c0_87 = arith.constant 0 : index
    %c112 = arith.constant 112 : index
    %c0_88 = arith.constant 0 : index
    %111 = vector.load %arg6[%c0_87, %c112, %c0_88] : memref<1x128x128xf32, #tpu.memory_space<vmem>>, vector<1x8x128xf32>
    %112 = vector.shape_cast %111 : vector<1x8x128xf32> to vector<8x128xf32>
    %113 = arith.truncf %112 : vector<8x128xf32> to vector<8x128xbf16>
    %c0_89 = arith.constant 0 : index
    %c0_90 = arith.constant 0 : index
    %114 = vector.load %arg4[%c0_89, %c0_90] : memref<128x128xbf16, #tpu.memory_space<vmem>>, vector<128x128xbf16>
    %cst_91 = arith.constant dense<0.000000e+00> : vector<8x128xf32>
    %115 = tpu.matmul %113, %114, %cst_91 {dimension_numbers = #tpu.dot_dimension_numbers<[1], [0], [0], [1], [0, 0, 1, 1], [], []>} : vector<8x128xbf16>, vector<128x128xbf16>, vector<8x128xf32> -> vector<8x128xf32>
    %c0_92 = arith.constant 0 : index
    %c0_93 = arith.constant 0 : index
    %116 = vector.load %arg5[%c0_92, %c0_93] : memref<1x128xf32, #tpu.memory_space<vmem>>, vector<1x128xf32>
    %117 = vector.broadcast %116 : vector<1x128xf32> to vector<8x128xf32>
    %118 = arith.addf %115, %117 : vector<8x128xf32>
    %c0_94 = arith.constant 0 : index
    %c112_95 = arith.constant 112 : index
    %c0_96 = arith.constant 0 : index
    %119 = vector.load %arg2[%c0_94, %c112_95, %c0_96] : memref<1x128x384xbf16, #tpu.memory_space<vmem>>, vector<1x8x384xbf16>
    %120 = vector.shape_cast %119 : vector<1x8x384xbf16> to vector<8x384xbf16>
    %c0_97 = arith.constant 0 : index
    %c0_98 = arith.constant 0 : index
    %121 = vector.load %arg7[%c0_97, %c0_98] : memref<384x128xbf16, #tpu.memory_space<vmem>>, vector<384x128xbf16>
    %cst_99 = arith.constant dense<0.000000e+00> : vector<8x128xf32>
    %122 = tpu.matmul %120, %121, %cst_99 {dimension_numbers = #tpu.dot_dimension_numbers<[1], [0], [0], [1], [0, 0, 1, 1], [], []>} : vector<8x384xbf16>, vector<384x128xbf16>, vector<8x128xf32> -> vector<8x128xf32>
    %123 = arith.addf %118, %122 : vector<8x128xf32>
    %124 = math.tanh %123 : vector<8x128xf32>
    %c0_100 = arith.constant 0 : index
    %c112_101 = arith.constant 112 : index
    %c0_102 = arith.constant 0 : index
    %125 = vector.load %arg6[%c0_100, %c112_101, %c0_102] : memref<1x128x128xf32, #tpu.memory_space<vmem>>, vector<1x8x128xf32>
    %126 = vector.shape_cast %125 : vector<1x8x128xf32> to vector<8x128xf32>
    %127 = vector.shape_cast %124 : vector<8x128xf32> to vector<1x8x128xf32>
    tpu.vector_store %arg6[%c0_100, %c112_101, %c0_102], %127 {strides = array<i32>} : memref<1x128x128xf32, #tpu.memory_space<vmem>>, vector<1x8x128xf32>,
    return
  }
  func.func @transform_0(%arg0: i32) -> (i32, i32, i32) {
    %c0_i32 = arith.constant 0 : i32
    %c0_i32_0 = arith.constant 0 : i32
    %c0_i32_1 = arith.constant 0 : i32
    return %arg0, %c0_i32, %c0_i32_0 : i32, i32, i32
  }
  func.func @transform_1(%arg0: i32) -> (i32, i32, i32) {
    %c0_i32 = arith.constant 0 : i32
    %c0_i32_0 = arith.constant 0 : i32
    %c0_i32_1 = arith.constant 0 : i32
    return %arg0, %c0_i32, %c0_i32_0 : i32, i32, i32
  }
  func.func @transform_2(%arg0: i32) -> (i32, i32) {
    %c0_i32 = arith.constant 0 : i32
    %c0_i32_0 = arith.constant 0 : i32
    %c0_i32_1 = arith.constant 0 : i32
    return %c0_i32, %c0_i32_0 : i32, i32
  }
  func.func @transform_3(%arg0: i32) -> (i32, i32) {
    %c0_i32 = arith.constant 0 : i32
    %c0_i32_0 = arith.constant 0 : i32
    %c0_i32_1 = arith.constant 0 : i32
    return %c0_i32, %c0_i32_0 : i32, i32
  }
  func.func @transform_4(%arg0: i32) -> (i32, i32) {
    %c0_i32 = arith.constant 0 : i32
    %c0_i32_0 = arith.constant 0 : i32
    %c0_i32_1 = arith.constant 0 : i32
    return %c0_i32, %c0_i32_0 : i32, i32
  }
  func.func @transform_5(%arg0: i32) -> (i32, i32, i32) {
    %c0_i32 = arith.constant 0 : i32
    %c0_i32_0 = arith.constant 0 : i32
    %c0_i32_1 = arith.constant 0 : i32
    return %arg0, %c0_i32, %c0_i32_0 : i32, i32, i32
  }
}

</mosaic_0001>

<llo_original>
// kernel: tpu_custom_call.1
$region0: #{tpu_custom_call.1}
  #allocation0 [shape = 'u32[]', space=smem, size = 0x4, offset = 0x4, fixed_abs, tag = 'smem constant byte address 0x4 - core index']
  #allocation1 [shape = 'u32[144,128]{1,0:T(1,128)}', space=vmem, size = 0x12000, scoped, tag = 'internal scratch']
  #allocation2 [shape = 'bf16[384,128]{1,0:T(16,128)(2,1)}', space=vmem, size = 0x18000, scoped, tag = 'scratch operand']
  %s0 = inlined_call_operand.hbm [shape: f32[2,128,128], index: 0, kind: input, shape index: {}, may-alias: {0,5}]
  %s1 = inlined_call_operand.vmem [shape: bf16[2,128,384], index: 1, kind: input, shape index: {}]
  %s2 = inlined_call_operand.vmem [shape: f32[3,128], index: 2, kind: input, shape index: {}]
  %s3 = inlined_call_operand.vmem [shape: bf16[128,128], index: 3, kind: input, shape index: {}]
  %s4 = inlined_call_operand.vmem [shape: f32[1,128], index: 4, kind: input, shape index: {}]
  %s5 = inlined_call_operand.hbm [shape: f32[2,128,128], index: 5, kind: output, shape index: {}, may-alias: {0,5}]
  %s6 = sld [smem:[#allocation0]]
  $region57: #{tpu_custom_call.1} parent=0
    _
  %s8 = ssub.s32 1, %s6
  %s9 = scalar_select 0, %s8, %s6
  $region1: #{tpu_custom_call.1} parent=0
    #allocation3 [shape = 'u8[131072]{0}', space=vmem, size = 0x20000, scoped, tag = 'input window, operand 0']
    #allocation4 [shape = 's32[2]{0}', space=sflag, size = 0x8, scoped, tag = 'scoped memory for tpu_custom_call.1']
    #allocation5 [shape = 's32[2]{0}', space=sflag, size = 0x8, scoped, tag = 'scoped memory for tpu_custom_call.1']
    #allocation6 [shape = 'u8[131072]{0}', space=vmem, size = 0x20000, scoped, tag = 'output window, operand 0']
    %10 = vsyncpa [#allocation4], 0
    %s11 = scalar_lea.sflag [#allocation4], 1
    %12 = vsyncpa %s11, 0
    %13 = vsyncpa [#allocation5], 0
    %s14 = scalar_lea.sflag [#allocation5], 1
    %15 = vsyncpa %s14, 0
    loop: start=0, step=1, limit=4
    $region2: #{tpu_custom_call.1} parent=1 // loop_pre_header
      _
    $region3: #{tpu_custom_call.1} parent=1 // loop_header
      %s17 = sphi 0, %s21
      %p18 = scmp.ge.s32.totalorder %s17, 4
      %s27 = sphi 0, %s29
      %s30 = sphi 0, %s27
      %s31 = sphi 0, %s30
      %s47 = sphi 0, %s31
      %s53 = sphi 0, %s55
      %s56 = sphi 0, %s53
      %s57 = sphi 0, %s56
      %s73 = sphi 0, %s57
      %s77 = sphi 0, %s77
      %s79 = sphi 0, %s77
      %s80 = sphi 0, %s79
      %s94 = sphi 0, %s80
      %s98 = sphi 0, %s98
      %s100 = sphi 0, %s98
      %s101 = sphi 0, %s100
      %s115 = sphi 0, %s101
      %s119 = sphi 0, %s119
      %s121 = sphi 0, %s119
      %s122 = sphi 0, %s121
      %s136 = sphi 0, %s122
      %s142 = sphi 0, %s144
      %s145 = sphi 0, %s142
      %s146 = sphi 0, %s145
      %s162 = sphi 0, %s146
    $region4: #{tpu_custom_call.1} parent=1 // loop_header_branch
      %20 = sbr.rel (%p18) target = $region8
    $region5: #{tpu_custom_call.1} parent=1 // loop_body
      %s22 = ssub.s32 %s17, 1
      %s23 = ssub.s32 %s17, 2
      %s24 = sadd.s32 %s17, 1
      %s25 = ssub.s32 %s17, %s24
      %p26 = scmp.eq.s32.totalorder %s25, 0
      %s28 = sadd.s32 %s27, 1
      %s29 = scalar_select %p26, %s27, %s28
      %p32 = pneg %p26
      %p33 = scmp.eq.s32.totalorder %s17, 1
      %p34 = por %p32, %p33
      %p35 = scmp.ne.s32.totalorder %s27, %s30
      %p36 = scmp.eq.s32.totalorder %s17, 0
      %p37 = por %p35, %p36
      %p38 = scmp.ne.s32.totalorder %s27, %s30
      %p39 = scmp.eq.s32.totalorder %s22, 1
      %p40 = por %p38, %p39
      %p41 = scmp.ne.s32.totalorder %s30, %s31
      %p42 = scmp.eq.s32.totalorder %s22, 0
      %p43 = por %p41, %p42
      %p44 = scmp.ne.s32.totalorder %s30, %s31
      %p45 = scmp.eq.s32.totalorder %s23, 1
      %p46 = por %p44, %p45
      %p48 = scmp.ne.s32.totalorder %s31, %s47
      %p49 = scmp.eq.s32.totalorder %s23, 0
      %p50 = por %p48, %p49
      %s51 = ssub.s32 %s17, %s24
      %p52 = scmp.eq.s32.totalorder %s51, 0
      %s54 = sadd.s32 %s53, 1
      %s55 = scalar_select %p52, %s53, %s54
      %p58 = pneg %p52
      %p59 = scmp.eq.s32.totalorder %s17, 1
      %p60 = por %p58, %p59
      %p61 = scmp.ne.s32.totalorder %s53, %s56
      %p62 = scmp.eq.s32.totalorder %s17, 0
      %p63 = por %p61, %p62
      %p64 = scmp.ne.s32.totalorder %s53, %s56
      %p65 = scmp.eq.s32.totalorder %s22, 1
      %p66 = por %p64, %p65
      %p67 = scmp.ne.s32.totalorder %s56, %s57
      %p68 = scmp.eq.s32.totalorder %s22, 0
      %p69 = por %p67, %p68
      %p70 = scmp.ne.s32.totalorder %s56, %s57
      %p71 = scmp.eq.s32.totalorder %s23, 1
      %p72 = por %p70, %p71
      %p74 = scmp.ne.s32.totalorder %s57, %s73
      %p75 = scmp.eq.s32.totalorder %s23, 0
      %p76 = por %p74, %p75
      %s78 = sadd.s32 %s77, 1
      %p81 = scmp.eq.s32.totalorder %s17, 1
      %p82 = scmp.ne.s32.totalorder %s77, %s79
      %p83 = scmp.eq.s32.totalorder %s17, 0
      %p84 = por %p82, %p83
      %p85 = scmp.ne.s32.totalorder %s77, %s79
      %p86 = scmp.eq.s32.totalorder %s22, 1
      %p87 = por %p85, %p86
      %p88 = scmp.ne.s32.totalorder %s79, %s80
      %p89 = scmp.eq.s32.totalorder %s22, 0
      %p90 = por %p88, %p89
      %p91 = scmp.ne.s32.totalorder %s79, %s80
      %p92 = scmp.eq.s32.totalorder %s23, 1
      %p93 = por %p91, %p92
      %p95 = scmp.ne.s32.totalorder %s80, %s94
      %p96 = scmp.eq.s32.totalorder %s23, 0
      %p97 = por %p95, %p96
      %s99 = sadd.s32 %s98, 1
      %p102 = scmp.eq.s32.totalorder %s17, 1
      %p103 = scmp.ne.s32.totalorder %s98, %s100
      %p104 = scmp.eq.s32.totalorder %s17, 0
      %p105 = por %p103, %p104
      %p106 = scmp.ne.s32.totalorder %s98, %s100
      %p107 = scmp.eq.s32.totalorder %s22, 1
      %p108 = por %p106, %p107
      %p109 = scmp.ne.s32.totalorder %s100, %s101
      %p110 = scmp.eq.s32.totalorder %s22, 0
      %p111 = por %p109, %p110
      %p112 = scmp.ne.s32.totalorder %s100, %s101
      %p113 = scmp.eq.s32.totalorder %s23, 1
      %p114 = por %p112, %p113
      %p116 = scmp.ne.s32.totalorder %s101, %s115
      %p117 = scmp.eq.s32.totalorder %s23, 0
      %p118 = por %p116, %p117
      %s120 = sadd.s32 %s119, 1
      %p123 = scmp.eq.s32.totalorder %s17, 1
      %p124 = scmp.ne.s32.totalorder %s119, %s121
      %p125 = scmp.eq.s32.totalorder %s17, 0
      %p126 = por %p124, %p125
      %p127 = scmp.ne.s32.totalorder %s119, %s121
      %p128 = scmp.eq.s32.totalorder %s22, 1
      %p129 = por %p127, %p128
      %p130 = scmp.ne.s32.totalorder %s121, %s122
      %p131 = scmp.eq.s32.totalorder %s22, 0
      %p132 = por %p130, %p131
      %p133 = scmp.ne.s32.totalorder %s121, %s122
      %p134 = scmp.eq.s32.totalorder %s23, 1
      %p135 = por %p133, %p134
      %p137 = scmp.ne.s32.totalorder %s122, %s136
      %p138 = scmp.eq.s32.totalorder %s23, 0
      %p139 = por %p137, %p138
      %s140 = ssub.s32 %s17, %s24
      %p141 = scmp.eq.s32.totalorder %s140, 0
      %s143 = sadd.s32 %s142, 1
      %s144 = scalar_select %p141, %s142, %s143
      %p147 = pneg %p141
      %p148 = scmp.eq.s32.totalorder %s17, 1
      %p149 = por %p147, %p148
      %p150 = scmp.ne.s32.totalorder %s142, %s145
      %p151 = scmp.eq.s32.totalorder %s17, 0
      %p152 = por %p150, %p151
      %p153 = scmp.ne.s32.totalorder %s142, %s145
      %p154 = scmp.eq.s32.totalorder %s22, 1
      %p155 = por %p153, %p154
      %p156 = scmp.ne.s32.totalorder %s145, %s146
      %p157 = scmp.eq.s32.totalorder %s22, 0
      %p158 = por %p156, %p157
      %p159 = scmp.ne.s32.totalorder %s145, %s146
      %p160 = scmp.eq.s32.totalorder %s23, 1
      %p161 = por %p159, %p160
      %p163 = scmp.ne.s32.totalorder %s146, %s162
      %p164 = scmp.eq.s32.totalorder %s23, 0
      %p165 = por %p163, %p164
      %p166 = scmp.le.s32.totalorder 1, %s17
      %p167 = scmp.lt.s32.totalorder %s17, 3
      %p168 = pnand %p166, %p167
      %p169 = pneg %p168
      // Predicated region
      $region9: #{tpu_custom_call.1} parent=5 // pred_check
        _
      $region10: #{tpu_custom_call.1} parent=5 // pred_check_branch
        %171 = sbr.rel (%p168) target = $region12
      $region11: #{tpu_custom_call.1} parent=5 // pred_region
        %s172 = ssub.s32 %s17, 1
        // Predicated region
        $region13: #{tpu_custom_call.1} parent=11 // pred_check
          %p173 = pneg %p90
        $region14: #{tpu_custom_call.1} parent=11 // pred_check_branch
          %175 = sbr.rel (%p173) target = $region16
        $region15: #{tpu_custom_call.1} parent=11 // pred_region
          _
        $region16: #{tpu_custom_call.1} parent=11 // pred_fallthru
          _
        // Predicated region
        $region17: #{tpu_custom_call.1} parent=11 // pred_check
          %p176 = pneg %p111
        $region18: #{tpu_custom_call.1} parent=11 // pred_check_branch
          %178 = sbr.rel (%p176) target = $region20
        $region19: #{tpu_custom_call.1} parent=11 // pred_region
          _
        $region20: #{tpu_custom_call.1} parent=11 // pred_fallthru
          _
        // Predicated region
        $region21: #{tpu_custom_call.1} parent=11 // pred_check
          %p179 = pneg %p132
        $region22: #{tpu_custom_call.1} parent=11 // pred_check_branch
          %181 = sbr.rel (%p179) target = $region24
        $region23: #{tpu_custom_call.1} parent=11 // pred_region
          _
        $region24: #{tpu_custom_call.1} parent=11 // pred_fallthru
          _
      $region12: #{tpu_custom_call.1} parent=5 // pred_fallthru
        _
      %p182 = scmp.lt.s32.totalorder %s17, 2
      // Predicated region
      $region25: #{tpu_custom_call.1} parent=5 // pred_check
        %p183 = pneg %p182
      $region26: #{tpu_custom_call.1} parent=5 // pred_check_branch
        %185 = sbr.rel (%p183) target = $region28
      $region27: #{tpu_custom_call.1} parent=5 // pred_region
        // Predicated region
        $region29: #{tpu_custom_call.1} parent=27 // pred_check
          %p186 = pneg %p37
        $region30: #{tpu_custom_call.1} parent=27 // pred_check_branch
          %188 = sbr.rel (%p186) target = $region32
        $region31: #{tpu_custom_call.1} parent=27 // pred_region
          %s189 = sand.u32 %s27, 1
          %s190 = scalar_lea.sflag [#allocation4], %s189
          %s191 = sand.u32 %s27, 1
          %s192 = smul.addr %s191, 128
          %s193 = scalar_lea.vmem [#allocation3], %s192
          %s195 = ssub.s32 2048, 2048
          %196 = vsyncadd %s190, %s195
          %s197 = smul.addr %s17, 16
          %s198 = smul.addr %s197, 128
          %s199 = scalar_lea.hbm %s0, %s198
          %s200 = sshll.u32 %s193, 4
          %s201 = int_to_ptr.vmem [resolvable:$true] %s200
          %206 = dma.hbm_to_vmem [thread:$0]  %s199, 2048, %s201, %s190, 128, 128, 8
        $region32: #{tpu_custom_call.1} parent=27 // pred_fallthru
          _
        // Predicated region
        $region33: #{tpu_custom_call.1} parent=27 // pred_check
          %p207 = pneg %p63
        $region34: #{tpu_custom_call.1} parent=27 // pred_check_branch
          %209 = sbr.rel (%p207) target = $region36
        $region35: #{tpu_custom_call.1} parent=27 // pred_region
          %p210 = scmp.lt.s32.totalorder %s17, 1
          %s211 = scalar_select %p210, %s17, 1
          %s212 = smul.addr %s211, 48
          %s213 = smul.addr %s212, 4
          %s214 = scalar_lea.vmem %s1, %s213
        $region36: #{tpu_custom_call.1} parent=27 // pred_fallthru
          _
      $region28: #{tpu_custom_call.1} parent=5 // pred_fallthru
        _
      %p215 = scmp.le.s32.totalorder 1, %s17
      %p216 = scmp.lt.s32.totalorder %s17, 3
      %p217 = pnand %p215, %p216
      %p218 = pneg %p217
      // Predicated region
      $region37: #{tpu_custom_call.1} parent=5 // pred_check
        _
      $region38: #{tpu_custom_call.1} parent=5 // pred_check_branch
        %220 = sbr.rel (%p217) target = $region40
      $region39: #{tpu_custom_call.1} parent=5 // pred_region
        %s221 = ssub.s32 %s17, 1
        %s222 = sand.u32 %s30, 1
        %s223 = scalar_lea.sflag [#allocation4], %s222
        %s224 = sand.u32 %s30, 1
        %s225 = smul.addr %s224, 128
        %s226 = scalar_lea.vmem [#allocation3], %s225
        // Predicated region
        $region41: #{tpu_custom_call.1} parent=39 // pred_check
          %p227 = pneg %p43
        $region42: #{tpu_custom_call.1} parent=39 // pred_check_branch
          %229 = sbr.rel (%p227) target = $region44
        $region43: #{tpu_custom_call.1} parent=39 // pred_region
          %230 = dma.done %s223, 2048
        $region44: #{tpu_custom_call.1} parent=39 // pred_fallthru
          _
        %s231 = sand.u32 %s30, 1
        %s232 = scalar_lea.sflag [#allocation4], %s231
        %s233 = sand.u32 %s30, 1
        %s234 = smul.addr %s233, 128
        %s235 = scalar_lea.vmem [#allocation3], %s234
        %p236 = pneg %p43
        %p237 = pneg %p40
        %p238 = scmp.lt.s32.totalorder %s22, 1
        %s239 = scalar_select %p238, %s22, 1
        %s240 = smul.addr %s239, 48
        %s241 = smul.addr %s240, 4
        %s242 = scalar_lea.vmem %s1, %s241
        %p243 = pneg %p69
        %p244 = pneg %p66
        %p245 = pneg %p90
        %p246 = pneg %p87
        %p247 = pneg %p111
        %p248 = pneg %p108
        %p249 = pneg %p132
        %p250 = pneg %p129
        %p251 = pneg %p158
        %p252 = pneg %p155
        %s253 = sand.u32 %s145, 1
        %s254 = scalar_lea.sflag [#allocation5], %s253
        %s255 = sand.u32 %s145, 1
        %s256 = smul.addr %s255, 128
        %s257 = scalar_lea.vmem [#allocation6], %s256
        %p258 = scmp.lt.s32.totalorder %s22, 1
        %s259 = scalar_select %p258, %s22, 1
        %s260 = smul.addr %s259, 48
        %s261 = smul.addr %s260, 4
        %s262 = scalar_lea.vmem %s1, %s261
        %v264 = vld [vmem:[%s226] sm:$0xff]
        %v265 = vld [vmem:[%s226 + $0x8] sm:$0xff]
        %v266 = vld [vmem:[%s226 + $0x10] sm:$0xff]
        %v267 = vld [vmem:[%s226 + $0x18] sm:$0xff]
        %v268 = vld [vmem:[%s226 + $0x20] sm:$0xff]
        %v269 = vld [vmem:[%s226 + $0x28] sm:$0xff]
        %v270 = vld [vmem:[%s226 + $0x30] sm:$0xff]
        %v271 = vld [vmem:[%s226 + $0x38] sm:$0xff]
        %v272 = vld [vmem:[%s226 + $0x40] sm:$0xff]
        %v273 = vld [vmem:[%s226 + $0x48] sm:$0xff]
        %v274 = vld [vmem:[%s226 + $0x50] sm:$0xff]
        %v275 = vld [vmem:[%s226 + $0x58] sm:$0xff]
        %v276 = vld [vmem:[%s226 + $0x60] sm:$0xff]
        %v277 = vld [vmem:[%s226 + $0x68] sm:$0xff]
        %v278 = vld [vmem:[%s226 + $0x70] sm:$0xff]
        %v279 = vld [vmem:[%s226 + $0x78] sm:$0xff]
        %280 = vst [vmem:[%s257] sm:$0xff] %v264
        %281 = vst [vmem:[%s257 + $0x8] sm:$0xff] %v265
        %282 = vst [vmem:[%s257 + $0x10] sm:$0xff] %v266
        %283 = vst [vmem:[%s257 + $0x18] sm:$0xff] %v267
        %284 = vst [vmem:[%s257 + $0x20] sm:$0xff] %v268
        %285 = vst [vmem:[%s257 + $0x28] sm:$0xff] %v269
        %286 = vst [vmem:[%s257 + $0x30] sm:$0xff] %v270
        %287 = vst [vmem:[%s257 + $0x38] sm:$0xff] %v271
        %288 = vst [vmem:[%s257 + $0x40] sm:$0xff] %v272
        %289 = vst [vmem:[%s257 + $0x48] sm:$0xff] %v273
        %290 = vst [vmem:[%s257 + $0x50] sm:$0xff] %v274
        %291 = vst [vmem:[%s257 + $0x58] sm:$0xff] %v275
        %292 = vst [vmem:[%s257 + $0x60] sm:$0xff] %v276
        %293 = vst [vmem:[%s257 + $0x68] sm:$0xff] %v277
        %294 = vst [vmem:[%s257 + $0x70] sm:$0xff] %v278
        %295 = vst [vmem:[%s257 + $0x78] sm:$0xff] %v279
        %v296 = vld [vmem:[%s2] sm:$0x1]
        %v297 = vlaneseq
        %v298 = vshrl.u32 %v297, 7
        %v299 = vsub.s32 0, %v298
        %v300 = vrot.slane %v296, %v299
        %v301 = vmul.f32 %v264, %v300
        %v302 = vmul.f32 %v265, %v300
        %v303 = vmul.f32 %v266, %v300
        %v304 = vmul.f32 %v267, %v300
        %v305 = vmul.f32 %v268, %v300
        %v306 = vmul.f32 %v269, %v300
        %v307 = vmul.f32 %v270, %v300
        %v308 = vmul.f32 %v271, %v300
        %v309 = vmul.f32 %v272, %v300
        %v310 = vmul.f32 %v273, %v300
        %v311 = vmul.f32 %v274, %v300
        %v312 = vmul.f32 %v275, %v300
        %v313 = vmul.f32 %v276, %v300
        %v314 = vmul.f32 %v277, %v300
        %v315 = vmul.f32 %v278, %v300
        %v316 = vmul.f32 %v279, %v300
        %v317 = vpack.c.bf16 %v302, %v301
        %v318 = vpack.c.bf16 %v304, %v303
        %v319 = vpack.c.bf16 %v306, %v305
        %v320 = vpack.c.bf16 %v308, %v307
        %v321 = vpack.c.bf16 %v310, %v309
        %v322 = vpack.c.bf16 %v312, %v311
        %v323 = vpack.c.bf16 %v314, %v313
        %v324 = vpack.c.bf16 %v316, %v315
        %325 = vst [vmem:[#allocation2] sm:$0xff] %v317
        %326 = vst [vmem:[#allocation2 + $0x8] sm:$0xff] %v318
        %327 = vst [vmem:[#allocation2 + $0x10] sm:$0xff] %v319
        %328 = vst [vmem:[#allocation2 + $0x18] sm:$0xff] %v320
        %329 = vst [vmem:[#allocation2 + $0x20] sm:$0xff] %v321
        %330 = vst [vmem:[#allocation2 + $0x28] sm:$0xff] %v322
        %331 = vst [vmem:[#allocation2 + $0x30] sm:$0xff] %v323
        %332 = vst [vmem:[#allocation2 + $0x38] sm:$0xff] %v324
        %v333 = vld [vmem:[%s2 + $0x1] sm:$0x1]
        %v334 = vlaneseq
        %v335 = vshrl.u32 %v334, 7
        %v336 = vsub.s32 0, %v335
        %v337 = vrot.slane %v333, %v336
        %v338 = vmul.f32 %v264, %v337
        %v339 = vmul.f32 %v265, %v337
        %v340 = vmul.f32 %v266, %v337
        %v341 = vmul.f32 %v267, %v337
        %v342 = vmul.f32 %v268, %v337
        %v343 = vmul.f32 %v269, %v337
        %v344 = vmul.f32 %v270, %v337
        %v345 = vmul.f32 %v271, %v337
        %v346 = vmul.f32 %v272, %v337
        %v347 = vmul.f32 %v273, %v337
        %v348 = vmul.f32 %v274, %v337
        %v349 = vmul.f32 %v275, %v337
        %v350 = vmul.f32 %v276, %v337
        %v351 = vmul.f32 %v277, %v337
        %v352 = vmul.f32 %v278, %v337
        %v353 = vmul.f32 %v279, %v337
        %v354 = vpack.c.bf16 %v339, %v338
        %v355 = vpack.c.bf16 %v341, %v340
        %v356 = vpack.c.bf16 %v343, %v342
        %v357 = vpack.c.bf16 %v345, %v344
        %v358 = vpack.c.bf16 %v347, %v346
        %v359 = vpack.c.bf16 %v349, %v348
        %v360 = vpack.c.bf16 %v351, %v350
        %v361 = vpack.c.bf16 %v353, %v352
        %362 = vst [vmem:[#allocation2 + $0x40] sm:$0xff] %v354
        %363 = vst [vmem:[#allocation2 + $0x48] sm:$0xff] %v355
        %364 = vst [vmem:[#allocation2 + $0x50] sm:$0xff] %v356
        %365 = vst [vmem:[#allocation2 + $0x58] sm:$0xff] %v357
        %366 = vst [vmem:[#allocation2 + $0x60] sm:$0xff] %v358
        %367 = vst [vmem:[#allocation2 + $0x68] sm:$0xff] %v359
        %368 = vst [vmem:[#allocation2 + $0x70] sm:$0xff] %v360
        %369 = vst [vmem:[#allocation2 + $0x78] sm:$0xff] %v361
        %v370 = vld [vmem:[%s2 + $0x2] sm:$0x1]
        %v371 = vlaneseq
        %v372 = vshrl.u32 %v371, 7
        %v373 = vsub.s32 0, %v372
        %v374 = vrot.slane %v370, %v373
        %v375 = vmul.f32 %v264, %v374
        %v376 = vmul.f32 %v265, %v374
        %v377 = vmul.f32 %v266, %v374
        %v378 = vmul.f32 %v267, %v374
        %v379 = vmul.f32 %v268, %v374
        %v380 = vmul.f32 %v269, %v374
        %v381 = vmul.f32 %v270, %v374
        %v382 = vmul.f32 %v271, %v374
        %v383 = vmul.f32 %v272, %v374
        %v384 = vmul.f32 %v273, %v374
        %v385 = vmul.f32 %v274, %v374
        %v386 = vmul.f32 %v275, %v374
        %v387 = vmul.f32 %v276, %v374
        %v388 = vmul.f32 %v277, %v374
        %v389 = vmul.f32 %v278, %v374
        %v390 = vmul.f32 %v279, %v374
        %v391 = vpack.c.bf16 %v376, %v375
        %v392 = vpack.c.bf16 %v378, %v377
        %v393 = vpack.c.bf16 %v380, %v379
        %v394 = vpack.c.bf16 %v382, %v381
        %v395 = vpack.c.bf16 %v384, %v383
        %v396 = vpack.c.bf16 %v386, %v385
        %v397 = vpack.c.bf16 %v388, %v387
        %v398 = vpack.c.bf16 %v390, %v389
        %399 = vst [vmem:[#allocation2 + $0x80] sm:$0xff] %v391
        %400 = vst [vmem:[#allocation2 + $0x88] sm:$0xff] %v392
        %401 = vst [vmem:[#allocation2 + $0x90] sm:$0xff] %v393
        %402 = vst [vmem:[#allocation2 + $0x98] sm:$0xff] %v394
        %403 = vst [vmem:[#allocation2 + $0xa0] sm:$0xff] %v395
        %404 = vst [vmem:[#allocation2 + $0xa8] sm:$0xff] %v396
        %405 = vst [vmem:[#allocation2 + $0xb0] sm:$0xff] %v397
        %406 = vst [vmem:[#allocation2 + $0xb8] sm:$0xff] %v398
        %v407 = vld [vmem:[%s257] sm:$0xff]
        %v408 = vld [vmem:[%s257 + $0x8] sm:$0xff]
        %v409 = vld [vmem:[%s257 + $0x10] sm:$0xff]
        %v410 = vld [vmem:[%s257 + $0x18] sm:$0xff]
        %v411 = vld [vmem:[%s257 + $0x20] sm:$0xff]
        %v412 = vld [vmem:[%s257 + $0x28] sm:$0xff]
        %v413 = vld [vmem:[%s257 + $0x30] sm:$0xff]
        %v414 = vld [vmem:[%s257 + $0x38] sm:$0xff]
        %v415 = vpack.c.bf16 %v408, %v407
        %v416 = vpack.c.bf16 %v410, %v409
        %v417 = vpack.c.bf16 %v412, %v411
        %v418 = vpack.c.bf16 %v414, %v413
        %v419 = vld [vmem:[%s3] sm:$0xf]
        %v420 = vld [vmem:[%s3 + $0x4] sm:$0xf]
        %v421 = vld [vmem:[%s3 + $0x8] sm:$0xf]
        %v422 = vld [vmem:[%s3 + $0xc] sm:$0xf]
        %v423 = vld [vmem:[%s3 + $0x10] sm:$0xf]
        %v424 = vld [vmem:[%s3 + $0x14] sm:$0xf]
        %v425 = vld [vmem:[%s3 + $0x18] sm:$0xf]
        %v426 = vld [vmem:[%s3 + $0x1c] sm:$0xf]
        %v427 = vld [vmem:[%s3 + $0x20] sm:$0xf]
        %v428 = vld [vmem:[%s3 + $0x24] sm:$0xf]
        %v429 = vld [vmem:[%s3 + $0x28] sm:$0xf]
        %v430 = vld [vmem:[%s3 + $0x2c] sm:$0xf]
        %v431 = vld [vmem:[%s3 + $0x30] sm:$0xf]
        %v432 = vld [vmem:[%s3 + $0x34] sm:$0xf]
        %v433 = vld [vmem:[%s3 + $0x38] sm:$0xf]
        %v434 = vld [vmem:[%s3 + $0x3c] sm:$0xf]
        %v435 = vld [vmem:[%s4] sm:$0x1]
        %v437 = vlaneseq
        %v438 = vshrl.u32 %v437, 7
        %v439 = vsub.s32 0, %v438
        %v440 = vrot.slane %v435, %v439
        %v458 = vunpack.c.l.b16 %v419
        %v459 = vunpack.c.l.b16 %v420
        %v460 = vunpack.c.l.b16 %v421
        %v461 = vunpack.c.l.b16 %v422
        %v462 = vunpack.c.l.b16 %v423
        %v463 = vunpack.c.l.b16 %v424
        %v464 = vunpack.c.l.b16 %v425
        %v465 = vunpack.c.l.b16 %v426
        %v466 = vunpack.c.l.b16 %v427
        %v467 = vunpack.c.l.b16 %v428
        %v468 = vunpack.c.l.b16 %v429
        %v469 = vunpack.c.l.b16 %v430
        %v470 = vunpack.c.l.b16 %v431
        %v471 = vunpack.c.l.b16 %v432
        %v472 = vunpack.c.l.b16 %v433
        %v473 = vunpack.c.l.b16 %v434
        %v474 = vpack.c.b16 %v459, %v458
        %v475 = vpack.c.b16 %v461, %v460
        %v476 = vpack.c.b16 %v463, %v462
        %v477 = vpack.c.b16 %v465, %v464
        %v478 = vpack.c.b16 %v467, %v466
        %v479 = vpack.c.b16 %v469, %v468
        %v480 = vpack.c.b16 %v471, %v470
        %v481 = vpack.c.b16 %v473, %v472
        %490 = vmatprep.subr.bf16.mxu0 0
        %491 = vmatpush1.bf16.msra.mxu0 %v474
        %492 = vmatprep.subr.bf16.mxu0 0
        %493 = vmatpush1.bf16.msra.mxu0 %v475
        %494 = vmatprep.subr.bf16.mxu0 0
        %495 = vmatpush1.bf16.msra.mxu0 %v476
        %496 = vmatprep.subr.bf16.mxu0 0
        %497 = vmatpush1.bf16.msra.mxu0 %v477
        %498 = vmatprep.subr.bf16.mxu0 0
        %499 = vmatpush1.bf16.msra.mxu0 %v478
        %500 = vmatprep.subr.bf16.mxu0 0
        %501 = vmatpush1.bf16.msra.mxu0 %v479
        %502 = vmatprep.subr.bf16.mxu0 0
        %503 = vmatpush1.bf16.msra.mxu0 %v480
        %504 = vmatprep.subr.bf16.mxu0 0
        %505 = vmatpush1.bf16.msra.mxu0 %v481
        %506 = vmatprep.subr.bf16.mxu0 0
        %507 = vmatpush1.bf16.msra.mxu0 0
        %508 = vmatprep.subr.bf16.mxu0 0
        %509 = vmatpush1.bf16.msra.mxu0 0
        %510 = vmatprep.subr.bf16.mxu0 0
        %511 = vmatpush1.bf16.msra.mxu0 0
        %512 = vmatprep.subr.bf16.mxu0 0
        %513 = vmatpush1.bf16.msra.mxu0 0
        %514 = vmatprep.subr.bf16.mxu0 0
        %515 = vmatpush1.bf16.msra.mxu0 0
        %516 = vmatprep.subr.bf16.mxu0 0
        %517 = vmatpush1.bf16.msra.mxu0 0
        %518 = vmatprep.subr.bf16.mxu0 0
        %519 = vmatpush1.bf16.msra.mxu0 0
        %520 = vmatprep.subr.bf16.mxu0 0
        %521 = vmatpush1.bf16.msra.mxu0 0
        %522 = vmatprep.mubr.bf16.mxu0 0
        %523 = vmatmul.mubr.bf16.gmra.mrb[0].mxu0 %v415
        %v524 = vpop.f32.mrb[0].mxu0
        %v525 = vadd.f32 %v440, %v524
        %v526 = vpop.f32.mrb[0].mxu0
        %v527 = vpop.f32.mrb[0].mxu0
        %v528 = vadd.f32 %v440, %v527
        %v529 = vpop.f32.mrb[0].mxu0
        %530 = vmatprep.mubr.bf16.mxu0 0
        %531 = vmatmul.mubr.bf16.gmra.mrb[0].mxu0 %v416
        %v532 = vpop.f32.mrb[0].mxu0
        %v533 = vadd.f32 %v440, %v532
        %v534 = vpop.f32.mrb[0].mxu0
        %v535 = vpop.f32.mrb[0].mxu0
        %v536 = vadd.f32 %v440, %v535
        %v537 = vpop.f32.mrb[0].mxu0
        %538 = vmatprep.mubr.bf16.mxu0 0
        %539 = vmatmul.mubr.bf16.gmra.mrb[0].mxu0 %v417
        %v540 = vpop.f32.mrb[0].mxu0
        %v541 = vadd.f32 %v440, %v540
        %v542 = vpop.f32.mrb[0].mxu0
        %v543 = vpop.f32.mrb[0].mxu0
        %v544 = vadd.f32 %v440, %v543
        %v545 = vpop.f32.mrb[0].mxu0
        %546 = vmatprep.mubr.bf16.mxu0 0
        %547 = vmatmul.mubr.bf16.gmra.mrb[0].mxu0 %v418
        %v548 = vpop.f32.mrb[0].mxu0
        %v549 = vadd.f32 %v440, %v548
        %v550 = vpop.f32.mrb[0].mxu0
        %v551 = vpop.f32.mrb[0].mxu0
        %v552 = vadd.f32 %v440, %v551
        %v553 = vpop.f32.mrb[0].mxu0
        %554 = vdwg.mxu0
        %v555 = vtanh.pop %v525
        %v556 = vtanh.pop %v528
        %v557 = vtanh.pop %v533
        %v558 = vtanh.pop %v536
        %v559 = vtanh.pop %v541
        %v560 = vtanh.pop %v544
        %v561 = vtanh.pop %v549
        %v562 = vtanh.pop %v552
        %563 = vst [vmem:[%s257] sm:$0xff] %v555
        %564 = vst [vmem:[%s257 + $0x8] sm:$0xff] %v556
        %565 = vst [vmem:[%s257 + $0x10] sm:$0xff] %v557
        %566 = vst [vmem:[%s257 + $0x18] sm:$0xff] %v558
        %567 = vst [vmem:[%s257 + $0x20] sm:$0xff] %v559
        %568 = vst [vmem:[%s257 + $0x28] sm:$0xff] %v560
        %569 = vst [vmem:[%s257 + $0x30] sm:$0xff] %v561
        %570 = vst [vmem:[%s257 + $0x38] sm:$0xff] %v562
        %v571 = vld [vmem:[%s2] sm:$0x1]
        %v572 = vlaneseq
        %v573 = vshrl.u32 %v572, 7
        %v574 = vsub.s32 0, %v573
        %v575 = vrot.slane %v571, %v574
        %v576 = vmul.f32 %v555, %v575
        %v577 = vmul.f32 %v556, %v575
        %v578 = vmul.f32 %v557, %v575
        %v579 = vmul.f32 %v558, %v575
        %v580 = vmul.f32 %v559, %v575
        %v581 = vmul.f32 %v560, %v575
        %v582 = vmul.f32 %v561, %v575
        %v583 = vmul.f32 %v562, %v575
        %v584 = vpack.c.bf16 %v577, %v576
        %v585 = vpack.c.bf16 %v579, %v578
        %v586 = vpack.c.bf16 %v581, %v580
        %v587 = vpack.c.bf16 %v583, %v582
        %588 = vst [vmem:[#allocation2] sm:$0xff] %v584
        %589 = vst [vmem:[#allocation2 + $0x8] sm:$0xff] %v585
        %590 = vst [vmem:[#allocation2 + $0x10] sm:$0xff] %v586
        %591 = vst [vmem:[#allocation2 + $0x18] sm:$0xff] %v587
        %v592 = vld [vmem:[%s2 + $0x1] sm:$0x1]
        %v593 = vlaneseq
        %v594 = vshrl.u32 %v593, 7
        %v595 = vsub.s32 0, %v594
        %v596 = vrot.slane %v592, %v595
        %v597 = vmul.f32 %v555, %v596
        %v598 = vmul.f32 %v556, %v596
        %v599 = vmul.f32 %v557, %v596
        %v600 = vmul.f32 %v558, %v596
        %v601 = vmul.f32 %v559, %v596
        %v602 = vmul.f32 %v560, %v596
        %v603 = vmul.f32 %v561, %v596
        %v604 = vmul.f32 %v562, %v596
        %v605 = vpack.c.bf16 %v598, %v597
        %v606 = vpack.c.bf16 %v600, %v599
        %v607 = vpack.c.bf16 %v602, %v601
        %v608 = vpack.c.bf16 %v604, %v603
        %609 = vst [vmem:[#allocation2 + $0x40] sm:$0xff] %v605
        %610 = vst [vmem:[#allocation2 + $0x48] sm:$0xff] %v606
        %611 = vst [vmem:[#allocation2 + $0x50] sm:$0xff] %v607
        %612 = vst [vmem:[#allocation2 + $0x58] sm:$0xff] %v608
        %v613 = vld [vmem:[%s2 + $0x2] sm:$0x1]
        %v614 = vlaneseq
        %v615 = vshrl.u32 %v614, 7
        %v616 = vsub.s32 0, %v615
        %v617 = vrot.slane %v613, %v616
        %v618 = vmul.f32 %v555, %v617
        %v619 = vmul.f32 %v556, %v617
        %v620 = vmul.f32 %v557, %v617
        %v621 = vmul.f32 %v558, %v617
        %v622 = vmul.f32 %v559, %v617
        %v623 = vmul.f32 %v560, %v617
        %v624 = vmul.f32 %v561, %v617
        %v625 = vmul.f32 %v562, %v617
        %v626 = vpack.c.bf16 %v619, %v618
        %v627 = vpack.c.bf16 %v621, %v620
        %v628 = vpack.c.bf16 %v623, %v622
        %v629 = vpack.c.bf16 %v625, %v624
        %630 = vst [vmem:[#allocation2 + $0x80] sm:$0xff] %v626
        %631 = vst [vmem:[#allocation2 + $0x88] sm:$0xff] %v627
        %632 = vst [vmem:[#allocation2 + $0x90] sm:$0xff] %v628
        %633 = vst [vmem:[#allocation2 + $0x98] sm:$0xff] %v629
        %v634 = vld [vmem:[%s257 + $0x40] sm:$0xff]
        %v635 = vld [vmem:[%s257 + $0x48] sm:$0xff]
        %v636 = vld [vmem:[%s257 + $0x50] sm:$0xff]
        %v637 = vld [vmem:[%s257 + $0x58] sm:$0xff]
        %v638 = vpack.c.bf16 %v635, %v634
        %v639 = vpack.c.bf16 %v637, %v636
        %v640 = vld [vmem:[%s3] sm:$0xf]
        %v641 = vld [vmem:[%s3 + $0x4] sm:$0xf]
        %v642 = vld [vmem:[%s3 + $0x8] sm:$0xf]
        %v643 = vld [vmem:[%s3 + $0xc] sm:$0xf]
        %v644 = vld [vmem:[%s3 + $0x10] sm:$0xf]
        %v645 = vld [vmem:[%s3 + $0x14] sm:$0xf]
        %v646 = vld [vmem:[%s3 + $0x18] sm:$0xf]
        %v647 = vld [vmem:[%s3 + $0x1c] sm:$0xf]
        %v648 = vld [vmem:[%s3 + $0x20] sm:$0xf]
        %v649 = vld [vmem:[%s3 + $0x24] sm:$0xf]
        %v650 = vld [vmem:[%s3 + $0x28] sm:$0xf]
        %v651 = vld [vmem:[%s3 + $0x2c] sm:$0xf]
        %v652 = vld [vmem:[%s3 + $0x30] sm:$0xf]
        %v653 = vld [vmem:[%s3 + $0x34] sm:$0xf]
        %v654 = vld [vmem:[%s3 + $0x38] sm:$0xf]
        %v655 = vld [vmem:[%s3 + $0x3c] sm:$0xf]
        %v656 = vld [vmem:[%s4] sm:$0x1]
        %v658 = vlaneseq
        %v659 = vshrl.u32 %v658, 7
        %v660 = vsub.s32 0, %v659
        %v661 = vrot.slane %v656, %v660
        %v679 = vunpack.c.l.b16 %v640
        %v680 = vunpack.c.l.b16 %v641
        %v681 = vunpack.c.l.b16 %v642
        %v682 = vunpack.c.l.b16 %v643
        %v683 = vunpack.c.l.b16 %v644
        %v684 = vunpack.c.l.b16 %v645
        %v685 = vunpack.c.l.b16 %v646
        %v686 = vunpack.c.l.b16 %v647
        %v687 = vunpack.c.l.b16 %v648
        %v688 = vunpack.c.l.b16 %v649
        %v689 = vunpack.c.l.b16 %v650
        %v690 = vunpack.c.l.b16 %v651
        %v691 = vunpack.c.l.b16 %v652
        %v692 = vunpack.c.l.b16 %v653
        %v693 = vunpack.c.l.b16 %v654
        %v694 = vunpack.c.l.b16 %v655
        %v695 = vpack.c.b16 %v680, %v679
        %v696 = vpack.c.b16 %v682, %v681
        %v697 = vpack.c.b16 %v684, %v683
        %v698 = vpack.c.b16 %v686, %v685
        %v699 = vpack.c.b16 %v688, %v687
        %v700 = vpack.c.b16 %v690, %v689
        %v701 = vpack.c.b16 %v692, %v691
        %v702 = vpack.c.b16 %v694, %v693
        %711 = vmatprep.subr.bf16.mxu0 0
        %712 = vmatpush1.bf16.msra.mxu0 %v695
        %713 = vmatprep.subr.bf16.mxu0 0
        %714 = vmatpush1.bf16.msra.mxu0 %v696
        %715 = vmatprep.subr.bf16.mxu0 0
        %716 = vmatpush1.bf16.msra.mxu0 %v697
        %717 = vmatprep.subr.bf16.mxu0 0
        %718 = vmatpush1.bf16.msra.mxu0 %v698
        %719 = vmatprep.subr.bf16.mxu0 0
        %720 = vmatpush1.bf16.msra.mxu0 %v699
        %721 = vmatprep.subr.bf16.mxu0 0
        %722 = vmatpush1.bf16.msra.mxu0 %v700
        %723 = vmatprep.subr.bf16.mxu0 0
        %724 = vmatpush1.bf16.msra.mxu0 %v701
        %725 = vmatprep.subr.bf16.mxu0 0
        %726 = vmatpush1.bf16.msra.mxu0 %v702
        %727 = vmatprep.subr.bf16.mxu0 0
        %728 = vmatpush1.bf16.msra.mxu0 0
        %729 = vmatprep.subr.bf16.mxu0 0
        %730 = vmatpush1.bf16.msra.mxu0 0
        %731 = vmatprep.subr.bf16.mxu0 0
        %732 = vmatpush1.bf16.msra.mxu0 0
        %733 = vmatprep.subr.bf16.mxu0 0
        %734 = vmatpush1.bf16.msra.mxu0 0
        %735 = vmatprep.subr.bf16.mxu0 0
        %736 = vmatpush1.bf16.msra.mxu0 0
        %737 = vmatprep.subr.bf16.mxu0 0
        %738 = vmatpush1.bf16.msra.mxu0 0
        %739 = vmatprep.subr.bf16.mxu0 0
        %740 = vmatpush1.bf16.msra.mxu0 0
        %741 = vmatprep.subr.bf16.mxu0 0
        %742 = vmatpush1.bf16.msra.mxu0 0
        %743 = vmatprep.mubr.bf16.mxu0 0
        %744 = vmatmul.mubr.bf16.gmra.mrb[0].mxu0 %v638
        %v745 = vpop.f32.mrb[0].mxu0
        %v746 = vadd.f32 %v661, %v745
        %v747 = vpop.f32.mrb[0].mxu0
        %v748 = vpop.f32.mrb[0].mxu0
        %v749 = vadd.f32 %v661, %v748
        %v750 = vpop.f32.mrb[0].mxu0
        %751 = vmatprep.mubr.bf16.mxu0 0
        %752 = vmatmul.mubr.bf16.gmra.mrb[0].mxu0 %v639
        %v753 = vpop.f32.mrb[0].mxu0
        %v754 = vadd.f32 %v661, %v753
        %v755 = vpop.f32.mrb[0].mxu0
        %v756 = vpop.f32.mrb[0].mxu0
        %v757 = vadd.f32 %v661, %v756
        %v758 = vpop.f32.mrb[0].mxu0
        %759 = vdwg.mxu0
        %v760 = vld [vmem:[%s262 + $0x60] sm:$0xff]
        %v761 = vld [vmem:[%s262 + $0x68] sm:$0xf]
        %v762 = vld [vmem:[%s262 + $0x6c] sm:$0xff]
        %v763 = vld [vmem:[%s262 + $0x74] sm:$0xf]
        %v764 = vld [vmem:[%s262 + $0x78] sm:$0xff]
        %v765 = vld [vmem:[%s262 + $0x80] sm:$0xf]
        %v766 = vld [vmem:[%s262 + $0x84] sm:$0xff]
        %v767 = vld [vmem:[%s262 + $0x8c] sm:$0xf]
        %v768 = vld [vmem:[#allocation2] sm:$0xff]
        %v769 = vld [vmem:[#allocation2 + $0x8] sm:$0xff]
        %v770 = vld [vmem:[#allocation2 + $0x10] sm:$0xff]
        %v771 = vld [vmem:[#allocation2 + $0x18] sm:$0xff]
        %v772 = vld [vmem:[#allocation2 + $0x20] sm:$0xff]
        %v773 = vld [vmem:[#allocation2 + $0x28] sm:$0xff]
        %v774 = vld [vmem:[#allocation2 + $0x30] sm:$0xff]
        %v775 = vld [vmem:[#allocation2 + $0x38] sm:$0xff]
        %v776 = vld [vmem:[#allocation2 + $0x40] sm:$0xff]
        %v777 = vld [vmem:[#allocation2 + $0x48] sm:$0xff]
        %v778 = vld [vmem:[#allocation2 + $0x50] sm:$0xff]
        %v779 = vld [vmem:[#allocation2 + $0x58] sm:$0xff]
        %v780 = vld [vmem:[#allocation2 + $0x60] sm:$0xff]
        %v781 = vld [vmem:[#allocation2 + $0x68] sm:$0xff]
        %v782 = vld [vmem:[#allocation2 + $0x70] sm:$0xff]
        %v783 = vld [vmem:[#allocation2 + $0x78] sm:$0xff]
        %v784 = vld [vmem:[#allocation2 + $0x80] sm:$0xff]
        %v785 = vld [vmem:[#allocation2 + $0x88] sm:$0xff]
        %v786 = vld [vmem:[#allocation2 + $0x90] sm:$0xff]
        %v787 = vld [vmem:[#allocation2 + $0x98] sm:$0xff]
        %v788 = vld [vmem:[#allocation2 + $0xa0] sm:$0xff]
        %v789 = vld [vmem:[#allocation2 + $0xa8] sm:$0xff]
        %v790 = vld [vmem:[#allocation2 + $0xb0] sm:$0xff]
        %v791 = vld [vmem:[#allocation2 + $0xb8] sm:$0xff]
        %v800 = vunpack.c.l.b16 %v760
        %v801 = vunpack.c.h.b16 %v760
        %v802 = vunpack.c.l.b16 %v761
        %v803 = vunpack.c.l.b16 %v762
        %v804 = vunpack.c.h.b16 %v762
        %v805 = vunpack.c.l.b16 %v763
        %v806 = vunpack.c.l.b16 %v764
        %v807 = vunpack.c.h.b16 %v764
        %v808 = vunpack.c.l.b16 %v765
        %v809 = vunpack.c.l.b16 %v766
        %v810 = vunpack.c.h.b16 %v766
        %v811 = vunpack.c.l.b16 %v767
        %v812 = vpack.c.b16 %v803, %v800
        %v813 = vpack.c.b16 %v804, %v801
        %v814 = vpack.c.b16 %v805, %v802
        %v815 = vpack.c.b16 %v809, %v806
        %v816 = vpack.c.b16 %v810, %v807
        %v817 = vpack.c.b16 %v811, %v808
        %824 = vmatprep.subr.bf16.mxu0 0
        %825 = vmatpush1.bf16.msra.mxu0 %v768
        %826 = vmatprep.subr.bf16.mxu0 0
        %827 = vmatpush1.bf16.msra.mxu0 %v769
        %828 = vmatprep.subr.bf16.mxu0 0
        %829 = vmatpush1.bf16.msra.mxu0 %v770
        %830 = vmatprep.subr.bf16.mxu0 0
        %831 = vmatpush1.bf16.msra.mxu0 %v771
        %832 = vmatprep.subr.bf16.mxu0 0
        %833 = vmatpush1.bf16.msra.mxu0 %v772
        %834 = vmatprep.subr.bf16.mxu0 0
        %835 = vmatpush1.bf16.msra.mxu0 %v773
        %836 = vmatprep.subr.bf16.mxu0 0
        %837 = vmatpush1.bf16.msra.mxu0 %v774
        %838 = vmatprep.subr.bf16.mxu0 0
        %839 = vmatpush1.bf16.msra.mxu0 %v775
        %840 = vmatprep.subr.bf16.mxu0 0
        %841 = vmatpush1.bf16.msra.mxu0 %v776
        %842 = vmatprep.subr.bf16.mxu0 0
        %843 = vmatpush1.bf16.msra.mxu0 %v777
        %844 = vmatprep.subr.bf16.mxu0 0
        %845 = vmatpush1.bf16.msra.mxu0 %v778
        %846 = vmatprep.subr.bf16.mxu0 0
        %847 = vmatpush1.bf16.msra.mxu0 %v779
        %848 = vmatprep.subr.bf16.mxu0 0
        %849 = vmatpush1.bf16.msra.mxu0 %v780
        %850 = vmatprep.subr.bf16.mxu0 0
        %851 = vmatpush1.bf16.msra.mxu0 %v781
        %852 = vmatprep.subr.bf16.mxu0 0
        %853 = vmatpush1.bf16.msra.mxu0 %v782
        %854 = vmatprep.subr.bf16.mxu0 0
        %855 = vmatpush1.bf16.msra.mxu0 %v783
        %856 = vmatprep.mubr.bf16.mxu0 %v813
        %857 = vmatmul.mubr.bf16.gmra.mrb[0].mxu0 %v812
        %v858 = vpop.f32.mrb[0].mxu0
        %v859 = vadd.f32 0.0, %v858
        %v860 = vpop.f32.mrb[0].mxu0
        %v861 = vpop.f32.mrb[0].mxu0
        %v862 = vadd.f32 0.0, %v861
        %v863 = vpop.f32.mrb[0].mxu0
        %864 = vmatprep.mubr.bf16.mxu0 %v816
        %865 = vmatmul.mubr.bf16.gmra.mrb[0].mxu0 %v815
        %v866 = vpop.f32.mrb[0].mxu0
        %v867 = vadd.f32 0.0, %v866
        %v868 = vpop.f32.mrb[0].mxu0
        %v869 = vpop.f32.mrb[0].mxu0
        %v870 = vadd.f32 0.0, %v869
        %v871 = vpop.f32.mrb[0].mxu0
        %872 = vdwg.mxu0
        %873 = vmatprep.subr.bf16.mxu0 0
        %874 = vmatpush1.bf16.msra.mxu0 %v784
        %875 = vmatprep.subr.bf16.mxu0 0
        %876 = vmatpush1.bf16.msra.mxu0 %v785
        %877 = vmatprep.subr.bf16.mxu0 0
        %878 = vmatpush1.bf16.msra.mxu0 %v786
        %879 = vmatprep.subr.bf16.mxu0 0
        %880 = vmatpush1.bf16.msra.mxu0 %v787
        %881 = vmatprep.subr.bf16.mxu0 0
        %882 = vmatpush1.bf16.msra.mxu0 %v788
        %883 = vmatprep.subr.bf16.mxu0 0
        %884 = vmatpush1.bf16.msra.mxu0 %v789
        %885 = vmatprep.subr.bf16.mxu0 0
        %886 = vmatpush1.bf16.msra.mxu0 %v790
        %887 = vmatprep.subr.bf16.mxu0 0
        %888 = vmatpush1.bf16.msra.mxu0 %v791
        %889 = vmatprep.subr.bf16.mxu0 0
        %890 = vmatpush1.bf16.msra.mxu0 0
        %891 = vmatprep.subr.bf16.mxu0 0
        %892 = vmatpush1.bf16.msra.mxu0 0
        %893 = vmatprep.subr.bf16.mxu0 0
        %894 = vmatpush1.bf16.msra.mxu0 0
        %895 = vmatprep.subr.bf16.mxu0 0
        %896 = vmatpush1.bf16.msra.mxu0 0
        %897 = vmatprep.subr.bf16.mxu0 0
        %898 = vmatpush1.bf16.msra.mxu0 0
        %899 = vmatprep.subr.bf16.mxu0 0
        %900 = vmatpush1.bf16.msra.mxu0 0
        %901 = vmatprep.subr.bf16.mxu0 0
        %902 = vmatpush1.bf16.msra.mxu0 0
        %903 = vmatprep.subr.bf16.mxu0 0
        %904 = vmatpush1.bf16.msra.mxu0 0
        %905 = vmatprep.mubr.bf16.mxu0 0
        %906 = vmatmul.mubr.bf16.gmra.mrb[0].mxu0 %v814
        %v907 = vpop.f32.mrb[0].mxu0
        %v908 = vadd.f32 %v859, %v907
        %v909 = vpop.f32.mrb[0].mxu0
        %v910 = vpop.f32.mrb[0].mxu0
        %v911 = vadd.f32 %v862, %v910
        %v912 = vpop.f32.mrb[0].mxu0
        %913 = vmatprep.mubr.bf16.mxu0 0
        %914 = vmatmul.mubr.bf16.gmra.mrb[0].mxu0 %v817
        %v915 = vpop.f32.mrb[0].mxu0
        %v916 = vadd.f32 %v867, %v915
        %v917 = vpop.f32.mrb[0].mxu0
        %v918 = vpop.f32.mrb[0].mxu0
        %v919 = vadd.f32 %v870, %v918
        %v920 = vpop.f32.mrb[0].mxu0
        %921 = vdwg.mxu0
        %v922 = vadd.f32 %v746, %v908
        %v923 = vadd.f32 %v749, %v911
        %v924 = vadd.f32 %v754, %v916
        %v925 = vadd.f32 %v757, %v919
        %v926 = vtanh.pop %v922
        %v927 = vtanh.pop %v923
        %v928 = vtanh.pop %v924
        %v929 = vtanh.pop %v925
        %930 = vst [vmem:[%s257 + $0x40] sm:$0xff] %v926
        %931 = vst [vmem:[%s257 + $0x48] sm:$0xff] %v927
        %932 = vst [vmem:[%s257 + $0x50] sm:$0xff] %v928
        %933 = vst [vmem:[%s257 + $0x58] sm:$0xff] %v929
        %v934 = vld [vmem:[%s2] sm:$0x1]
        %v935 = vlaneseq
        %v936 = vshrl.u32 %v935, 7
        %v937 = vsub.s32 0, %v936
        %v938 = vrot.slane %v934, %v937
        %v939 = vmul.f32 %v926, %v938
        %v940 = vmul.f32 %v927, %v938
        %v941 = vmul.f32 %v928, %v938
        %v942 = vmul.f32 %v929, %v938
        %v943 = vpack.c.bf16 %v940, %v939
        %v944 = vpack.c.bf16 %v942, %v941
        %945 = vst [vmem:[#allocation2 + $0x20] sm:$0xff] %v943
        %946 = vst [vmem:[#allocation2 + $0x28] sm:$0xff] %v944
        %v947 = vld [vmem:[%s2 + $0x1] sm:$0x1]
        %v948 = vlaneseq
        %v949 = vshrl.u32 %v948, 7
        %v950 = vsub.s32 0, %v949
        %v951 = vrot.slane %v947, %v950
        %v952 = vmul.f32 %v926, %v951
        %v953 = vmul.f32 %v927, %v951
        %v954 = vmul.f32 %v928, %v951
        %v955 = vmul.f32 %v929, %v951
        %v956 = vpack.c.bf16 %v953, %v952
        %v957 = vpack.c.bf16 %v955, %v954
        %958 = vst [vmem:[#allocation2 + $0x60] sm:$0xff] %v956
        %959 = vst [vmem:[#allocation2 + $0x68] sm:$0xff] %v957
        %v960 = vld [vmem:[%s2 + $0x2] sm:$0x1]
        %v961 = vlaneseq
        %v962 = vshrl.u32 %v961, 7
        %v963 = vsub.s32 0, %v962
        %v964 = vrot.slane %v960, %v963
        %v965 = vmul.f32 %v926, %v964
        %v966 = vmul.f32 %v927, %v964
        %v967 = vmul.f32 %v928, %v964
        %v968 = vmul.f32 %v929, %v964
        %v969 = vpack.c.bf16 %v966, %v965
        %v970 = vpack.c.bf16 %v968, %v967
        %971 = vst [vmem:[#allocation2 + $0xa0] sm:$0xff] %v969
        %972 = vst [vmem:[#allocation2 + $0xa8] sm:$0xff] %v970
        %v973 = vld [vmem:[%s257 + $0x60] sm:$0xff]
        %v974 = vld [vmem:[%s257 + $0x68] sm:$0xff]
        %v975 = vpack.c.bf16 %v974, %v973
        %v976 = vld [vmem:[%s3] sm:$0xf]
        %v977 = vld [vmem:[%s3 + $0x4] sm:$0xf]
        %v978 = vld [vmem:[%s3 + $0x8] sm:$0xf]
        %v979 = vld [vmem:[%s3 + $0xc] sm:$0xf]
        %v980 = vld [vmem:[%s3 + $0x10] sm:$0xf]
        %v981 = vld [vmem:[%s3 + $0x14] sm:$0xf]
        %v982 = vld [vmem:[%s3 + $0x18] sm:$0xf]
        %v983 = vld [vmem:[%s3 + $0x1c] sm:$0xf]
        %v984 = vld [vmem:[%s3 + $0x20] sm:$0xf]
        %v985 = vld [vmem:[%s3 + $0x24] sm:$0xf]
        %v986 = vld [vmem:[%s3 + $0x28] sm:$0xf]
        %v987 = vld [vmem:[%s3 + $0x2c] sm:$0xf]
        %v988 = vld [vmem:[%s3 + $0x30] sm:$0xf]
        %v989 = vld [vmem:[%s3 + $0x34] sm:$0xf]
        %v990 = vld [vmem:[%s3 + $0x38] sm:$0xf]
        %v991 = vld [vmem:[%s3 + $0x3c] sm:$0xf]
        %v992 = vld [vmem:[%s4] sm:$0x1]
        %v994 = vlaneseq
        %v995 = vshrl.u32 %v994, 7
        %v996 = vsub.s32 0, %v995
        %v997 = vrot.slane %v992, %v996
        %v1015 = vunpack.c.l.b16 %v976
        %v1016 = vunpack.c.l.b16 %v977
        %v1017 = vunpack.c.l.b16 %v978
        %v1018 = vunpack.c.l.b16 %v979
        %v1019 = vunpack.c.l.b16 %v980
        %v1020 = vunpack.c.l.b16 %v981
        %v1021 = vunpack.c.l.b16 %v982
        %v1022 = vunpack.c.l.b16 %v983
        %v1023 = vunpack.c.l.b16 %v984
        %v1024 = vunpack.c.l.b16 %v985
        %v1025 = vunpack.c.l.b16 %v986
        %v1026 = vunpack.c.l.b16 %v987
        %v1027 = vunpack.c.l.b16 %v988
        %v1028 = vunpack.c.l.b16 %v989
        %v1029 = vunpack.c.l.b16 %v990
        %v1030 = vunpack.c.l.b16 %v991
        %v1031 = vpack.c.b16 %v1016, %v1015
        %v1032 = vpack.c.b16 %v1018, %v1017
        %v1033 = vpack.c.b16 %v1020, %v1019
        %v1034 = vpack.c.b16 %v1022, %v1021
        %v1035 = vpack.c.b16 %v1024, %v1023
        %v1036 = vpack.c.b16 %v1026, %v1025
        %v1037 = vpack.c.b16 %v1028, %v1027
        %v1038 = vpack.c.b16 %v1030, %v1029
        %1047 = vmatprep.subr.bf16.mxu0 0
        %1048 = vmatpush1.bf16.msra.mxu0 %v1031
        %1049 = vmatprep.subr.bf16.mxu0 0
        %1050 = vmatpush1.bf16.msra.mxu0 %v1032
        %1051 = vmatprep.subr.bf16.mxu0 0
        %1052 = vmatpush1.bf16.msra.mxu0 %v1033
        %1053 = vmatprep.subr.bf16.mxu0 0
        %1054 = vmatpush1.bf16.msra.mxu0 %v1034
        %1055 = vmatprep.subr.bf16.mxu0 0
        %1056 = vmatpush1.bf16.msra.mxu0 %v1035
        %1057 = vmatprep.subr.bf16.mxu0 0
        %1058 = vmatpush1.bf16.msra.mxu0 %v1036
        %1059 = vmatprep.subr.bf16.mxu0 0
        %1060 = vmatpush1.bf16.msra.mxu0 %v1037
        %1061 = vmatprep.subr.bf16.mxu0 0
        %1062 = vmatpush1.bf16.msra.mxu0 %v1038
        %1063 = vmatprep.subr.bf16.mxu0 0
        %1064 = vmatpush1.bf16.msra.mxu0 0
        %1065 = vmatprep.subr.bf16.mxu0 0
        %1066 = vmatpush1.bf16.msra.mxu0 0
        %1067 = vmatprep.subr.bf16.mxu0 0
        %1068 = vmatpush1.bf16.msra.mxu0 0
        %1069 = vmatprep.subr.bf16.mxu0 0
        %1070 = vmatpush1.bf16.msra.mxu0 0
        %1071 = vmatprep.subr.bf16.mxu0 0
        %1072 = vmatpush1.bf16.msra.mxu0 0
        %1073 = vmatprep.subr.bf16.mxu0 0
        %1074 = vmatpush1.bf16.msra.mxu0 0
        %1075 = vmatprep.subr.bf16.mxu0 0
        %1076 = vmatpush1.bf16.msra.mxu0 0
        %1077 = vmatprep.subr.bf16.mxu0 0
        %1078 = vmatpush1.bf16.msra.mxu0 0
        %1079 = vmatprep.mubr.bf16.mxu0 0
        %1080 = vmatmul.mubr.bf16.gmra.mrb[0].mxu0 %v975
        %v1081 = vpop.f32.mrb[0].mxu0
        %v1082 = vadd.f32 %v997, %v1081
        %v1083 = vpop.f32.mrb[0].mxu0
        %v1084 = vpop.f32.mrb[0].mxu0
        %v1085 = vadd.f32 %v997, %v1084
        %v1086 = vpop.f32.mrb[0].mxu0
        %1087 = vdwg.mxu0
        %v1088 = vld [vmem:[%s262 + $0x90] sm:$0xff]
        %v1089 = vld [vmem:[%s262 + $0x98] sm:$0xf]
        %v1090 = vld [vmem:[%s262 + $0x9c] sm:$0xff]
        %v1091 = vld [vmem:[%s262 + $0xa4] sm:$0xf]
        %v1092 = vld [vmem:[#allocation2] sm:$0xff]
        %v1093 = vld [vmem:[#allocation2 + $0x8] sm:$0xff]
        %v1094 = vld [vmem:[#allocation2 + $0x10] sm:$0xff]
        %v1095 = vld [vmem:[#allocation2 + $0x18] sm:$0xff]
        %v1096 = vld [vmem:[#allocation2 + $0x20] sm:$0xff]
        %v1097 = vld [vmem:[#allocation2 + $0x28] sm:$0xff]
        %v1098 = vld [vmem:[#allocation2 + $0x30] sm:$0xff]
        %v1099 = vld [vmem:[#allocation2 + $0x38] sm:$0xff]
        %v1100 = vld [vmem:[#allocation2 + $0x40] sm:$0xff]
        %v1101 = vld [vmem:[#allocation2 + $0x48] sm:$0xff]
        %v1102 = vld [vmem:[#allocation2 + $0x50] sm:$0xff]
        %v1103 = vld [vmem:[#allocation2 + $0x58] sm:$0xff]
        %v1104 = vld [vmem:[#allocation2 + $0x60] sm:$0xff]
        %v1105 = vld [vmem:[#allocation2 + $0x68] sm:$0xff]
        %v1106 = vld [vmem:[#allocation2 + $0x70] sm:$0xff]
        %v1107 = vld [vmem:[#allocation2 + $0x78] sm:$0xff]
        %v1108 = vld [vmem:[#allocation2 + $0x80] sm:$0xff]
        %v1109 = vld [vmem:[#allocation2 + $0x88] sm:$0xff]
        %v1110 = vld [vmem:[#allocation2 + $0x90] sm:$0xff]
        %v1111 = vld [vmem:[#allocation2 + $0x98] sm:$0xff]
        %v1112 = vld [vmem:[#allocation2 + $0xa0] sm:$0xff]
        %v1113 = vld [vmem:[#allocation2 + $0xa8] sm:$0xff]
        %v1114 = vld [vmem:[#allocation2 + $0xb0] sm:$0xff]
        %v1115 = vld [vmem:[#allocation2 + $0xb8] sm:$0xff]
        %v1120 = vunpack.c.l.b16 %v1088
        %v1121 = vunpack.c.h.b16 %v1088
        %v1122 = vunpack.c.l.b16 %v1089
        %v1123 = vunpack.c.l.b16 %v1090
        %v1124 = vunpack.c.h.b16 %v1090
        %v1125 = vunpack.c.l.b16 %v1091
        %v1126 = vpack.c.b16 %v1123, %v1120
        %v1127 = vpack.c.b16 %v1124, %v1121
        %v1128 = vpack.c.b16 %v1125, %v1122
        %1132 = vmatprep.subr.bf16.mxu0 0
        %1133 = vmatpush1.bf16.msra.mxu0 %v1092
        %1134 = vmatprep.subr.bf16.mxu0 0
        %1135 = vmatpush1.bf16.msra.mxu0 %v1093
        %1136 = vmatprep.subr.bf16.mxu0 0
        %1137 = vmatpush1.bf16.msra.mxu0 %v1094
        %1138 = vmatprep.subr.bf16.mxu0 0
        %1139 = vmatpush1.bf16.msra.mxu0 %v1095
        %1140 = vmatprep.subr.bf16.mxu0 0
        %1141 = vmatpush1.bf16.msra.mxu0 %v1096
        %1142 = vmatprep.subr.bf16.mxu0 0
        %1143 = vmatpush1.bf16.msra.mxu0 %v1097
        %1144 = vmatprep.subr.bf16.mxu0 0
        %1145 = vmatpush1.bf16.msra.mxu0 %v1098
        %1146 = vmatprep.subr.bf16.mxu0 0
        %1147 = vmatpush1.bf16.msra.mxu0 %v1099
        %1148 = vmatprep.subr.bf16.mxu0 0
        %1149 = vmatpush1.bf16.msra.mxu0 %v1100
        %1150 = vmatprep.subr.bf16.mxu0 0
        %1151 = vmatpush1.bf16.msra.mxu0 %v1101
        %1152 = vmatprep.subr.bf16.mxu0 0
        %1153 = vmatpush1.bf16.msra.mxu0 %v1102
        %1154 = vmatprep.subr.bf16.mxu0 0
        %1155 = vmatpush1.bf16.msra.mxu0 %v1103
        %1156 = vmatprep.subr.bf16.mxu0 0
        %1157 = vmatpush1.bf16.msra.mxu0 %v1104
        %1158 = vmatprep.subr.bf16.mxu0 0
        %1159 = vmatpush1.bf16.msra.mxu0 %v1105
        %1160 = vmatprep.subr.bf16.mxu0 0
        %1161 = vmatpush1.bf16.msra.mxu0 %v1106
        %1162 = vmatprep.subr.bf16.mxu0 0
        %1163 = vmatpush1.bf16.msra.mxu0 %v1107
        %1164 = vmatprep.mubr.bf16.mxu0 %v1127
        %1165 = vmatmul.mubr.bf16.gmra.mrb[0].mxu0 %v1126
        %v1166 = vpop.f32.mrb[0].mxu0
        %v1167 = vadd.f32 0.0, %v1166
        %v1168 = vpop.f32.mrb[0].mxu0
        %v1169 = vpop.f32.mrb[0].mxu0
        %v1170 = vadd.f32 0.0, %v1169
        %v1171 = vpop.f32.mrb[0].mxu0
        %1172 = vdwg.mxu0
        %1173 = vmatprep.subr.bf16.mxu0 0
        %1174 = vmatpush1.bf16.msra.mxu0 %v1108
        %1175 = vmatprep.subr.bf16.mxu0 0
        %1176 = vmatpush1.bf16.msra.mxu0 %v1109
        %1177 = vmatprep.subr.bf16.mxu0 0
        %1178 = vmatpush1.bf16.msra.mxu0 %v1110
        %1179 = vmatprep.subr.bf16.mxu0 0
        %1180 = vmatpush1.bf16.msra.mxu0 %v1111
        %1181 = vmatprep.subr.bf16.mxu0 0
        %1182 = vmatpush1.bf16.msra.mxu0 %v1112
        %1183 = vmatprep.subr.bf16.mxu0 0
        %1184 = vmatpush1.bf16.msra.mxu0 %v1113
        %1185 = vmatprep.subr.bf16.mxu0 0
        %1186 = vmatpush1.bf16.msra.mxu0 %v1114
        %1187 = vmatprep.subr.bf16.mxu0 0
        %1188 = vmatpush1.bf16.msra.mxu0 %v1115
        %1189 = vmatprep.subr.bf16.mxu0 0
        %1190 = vmatpush1.bf16.msra.mxu0 0
        %1191 = vmatprep.subr.bf16.mxu0 0
        %1192 = vmatpush1.bf16.msra.mxu0 0
        %1193 = vmatprep.subr.bf16.mxu0 0
        %1194 = vmatpush1.bf16.msra.mxu0 0
        %1195 = vmatprep.subr.bf16.mxu0 0
        %1196 = vmatpush1.bf16.msra.mxu0 0
        %1197 = vmatprep.subr.bf16.mxu0 0
        %1198 = vmatpush1.bf16.msra.mxu0 0
        %1199 = vmatprep.subr.bf16.mxu0 0
        %1200 = vmatpush1.bf16.msra.mxu0 0
        %1201 = vmatprep.subr.bf16.mxu0 0
        %1202 = vmatpush1.bf16.msra.mxu0 0
        %1203 = vmatprep.subr.bf16.mxu0 0
        %1204 = vmatpush1.bf16.msra.mxu0 0
        %1205 = vmatprep.mubr.bf16.mxu0 0
        %1206 = vmatmul.mubr.bf16.gmra.mrb[0].mxu0 %v1128
        %v1207 = vpop.f32.mrb[0].mxu0
        %v1208 = vadd.f32 %v1167, %v1207
        %v1209 = vpop.f32.mrb[0].mxu0
        %v1210 = vpop.f32.mrb[0].mxu0
        %v1211 = vadd.f32 %v1170, %v1210
        %v1212 = vpop.f32.mrb[0].mxu0
        %1213 = vdwg.mxu0
        %v1214 = vadd.f32 %v1082, %v1208
        %v1215 = vadd.f32 %v1085, %v1211
        %v1216 = vtanh.pop %v1214
        %v1217 = vtanh.pop %v1215
        %1218 = vst [vmem:[%s257 + $0x60] sm:$0xff] %v1216
        %1219 = vst [vmem:[%s257 + $0x68] sm:$0xff] %v1217
        %v1220 = vld [vmem:[%s2] sm:$0x1]
        %v1221 = vlaneseq
        %v1222 = vshrl.u32 %v1221, 7
        %v1223 = vsub.s32 0, %v1222
        %v1224 = vrot.slane %v1220, %v1223
        %v1225 = vmul.f32 %v1216, %v1224
        %v1226 = vmul.f32 %v1217, %v1224
        %v1227 = vpack.c.bf16 %v1226, %v1225
        %1228 = vst [vmem:[#allocation2 + $0x30] sm:$0xff] %v1227
        %v1229 = vld [vmem:[%s2 + $0x1] sm:$0x1]
        %v1230 = vlaneseq
        %v1231 = vshrl.u32 %v1230, 7
        %v1232 = vsub.s32 0, %v1231
        %v1233 = vrot.slane %v1229, %v1232
        %v1234 = vmul.f32 %v1216, %v1233
        %v1235 = vmul.f32 %v1217, %v1233
        %v1236 = vpack.c.bf16 %v1235, %v1234
        %1237 = vst [vmem:[#allocation2 + $0x70] sm:$0xff] %v1236
        %v1238 = vld [vmem:[%s2 + $0x2] sm:$0x1]
        %v1239 = vlaneseq
        %v1240 = vshrl.u32 %v1239, 7
        %v1241 = vsub.s32 0, %v1240
        %v1242 = vrot.slane %v1238, %v1241
        %v1243 = vmul.f32 %v1216, %v1242
        %v1244 = vmul.f32 %v1217, %v1242
        %v1245 = vpack.c.bf16 %v1244, %v1243
        %1246 = vst [vmem:[#allocation2 + $0xb0] sm:$0xff] %v1245
        %v1247 = vld [vmem:[%s257 + $0x70] sm:$0xff]
        %v1248 = vpack.c.bf16 %v1247, %v1247
        %v1249 = vld [vmem:[%s3] sm:$0xf]
        %v1250 = vld [vmem:[%s3 + $0x4] sm:$0xf]
        %v1251 = vld [vmem:[%s3 + $0x8] sm:$0xf]
        %v1252 = vld [vmem:[%s3 + $0xc] sm:$0xf]
        %v1253 = vld [vmem:[%s3 + $0x10] sm:$0xf]
        %v1254 = vld [vmem:[%s3 + $0x14] sm:$0xf]
        %v1255 = vld [vmem:[%s3 + $0x18] sm:$0xf]
        %v1256 = vld [vmem:[%s3 + $0x1c] sm:$0xf]
        %v1257 = vld [vmem:[%s3 + $0x20] sm:$0xf]
        %v1258 = vld [vmem:[%s3 + $0x24] sm:$0xf]
        %v1259 = vld [vmem:[%s3 + $0x28] sm:$0xf]
        %v1260 = vld [vmem:[%s3 + $0x2c] sm:$0xf]
        %v1261 = vld [vmem:[%s3 + $0x30] sm:$0xf]
        %v1262 = vld [vmem:[%s3 + $0x34] sm:$0xf]
        %v1263 = vld [vmem:[%s3 + $0x38] sm:$0xf]
        %v1264 = vld [vmem:[%s3 + $0x3c] sm:$0xf]
        %v1265 = vld [vmem:[%s4] sm:$0x1]
        %v1267 = vlaneseq
        %v1268 = vshrl.u32 %v1267, 7
        %v1269 = vsub.s32 0, %v1268
        %v1270 = vrot.slane %v1265, %v1269
        %v1288 = vunpack.c.l.b16 %v1249
        %v1289 = vunpack.c.l.b16 %v1250
        %v1290 = vunpack.c.l.b16 %v1251
        %v1291 = vunpack.c.l.b16 %v1252
        %v1292 = vunpack.c.l.b16 %v1253
        %v1293 = vunpack.c.l.b16 %v1254
        %v1294 = vunpack.c.l.b16 %v1255
        %v1295 = vunpack.c.l.b16 %v1256
        %v1296 = vunpack.c.l.b16 %v1257
        %v1297 = vunpack.c.l.b16 %v1258
        %v1298 = vunpack.c.l.b16 %v1259
        %v1299 = vunpack.c.l.b16 %v1260
        %v1300 = vunpack.c.l.b16 %v1261
        %v1301 = vunpack.c.l.b16 %v1262
        %v1302 = vunpack.c.l.b16 %v1263
        %v1303 = vunpack.c.l.b16 %v1264
        %v1304 = vpack.c.b16 %v1289, %v1288
        %v1305 = vpack.c.b16 %v1291, %v1290
        %v1306 = vpack.c.b16 %v1293, %v1292
        %v1307 = vpack.c.b16 %v1295, %v1294
        %v1308 = vpack.c.b16 %v1297, %v1296
        %v1309 = vpack.c.b16 %v1299, %v1298
        %v1310 = vpack.c.b16 %v1301, %v1300
        %v1311 = vpack.c.b16 %v1303, %v1302
        %1320 = vmatprep.subr.bf16.mxu0 0
        %1321 = vmatpush1.bf16.msra.mxu0 %v1304
        %1322 = vmatprep.subr.bf16.mxu0 0
        %1323 = vmatpush1.bf16.msra.mxu0 %v1305
        %1324 = vmatprep.subr.bf16.mxu0 0
        %1325 = vmatpush1.bf16.msra.mxu0 %v1306
        %1326 = vmatprep.subr.bf16.mxu0 0
        %1327 = vmatpush1.bf16.msra.mxu0 %v1307
        %1328 = vmatprep.subr.bf16.mxu0 0
        %1329 = vmatpush1.bf16.msra.mxu0 %v1308
        %1330 = vmatprep.subr.bf16.mxu0 0
        %1331 = vmatpush1.bf16.msra.mxu0 %v1309
        %1332 = vmatprep.subr.bf16.mxu0 0
        %1333 = vmatpush1.bf16.msra.mxu0 %v1310
        %1334 = vmatprep.subr.bf16.mxu0 0
        %1335 = vmatpush1.bf16.msra.mxu0 %v1311
        %1336 = vmatprep.subr.bf16.mxu0 0
        %1337 = vmatpush1.bf16.msra.mxu0 0
        %1338 = vmatprep.subr.bf16.mxu0 0
        %1339 = vmatpush1.bf16.msra.mxu0 0
        %1340 = vmatprep.subr.bf16.mxu0 0
        %1341 = vmatpush1.bf16.msra.mxu0 0
        %1342 = vmatprep.subr.bf16.mxu0 0
        %1343 = vmatpush1.bf16.msra.mxu0 0
        %1344 = vmatprep.subr.bf16.mxu0 0
        %1345 = vmatpush1.bf16.msra.mxu0 0
        %1346 = vmatprep.subr.bf16.mxu0 0
        %1347 = vmatpush1.bf16.msra.mxu0 0
        %1348 = vmatprep.subr.bf16.mxu0 0
        %1349 = vmatpush1.bf16.msra.mxu0 0
        %1350 = vmatprep.subr.bf16.mxu0 0
        %1351 = vmatpush1.bf16.msra.mxu0 0
        %1352 = vmatprep.mubr.bf16.mxu0 0
        %1353 = vmatmul.mubr.bf16.gmra.mrb[0].mxu0 %v1248
        %v1354 = vpop.f32.mrb[0].mxu0
        %v1355 = vadd.f32 %v1270, %v1354
        %v1356 = vpop.f32.mrb[0].mxu0
        %v1357 = vpop.f32.mrb[0].mxu0
        %v1358 = vpop.f32.mrb[0].mxu0
        %1359 = vdwg.mxu0
        %v1360 = vld [vmem:[%s262 + $0xa8] sm:$0xff]
        %v1361 = vld [vmem:[%s262 + $0xb0] sm:$0xf]
        %v1362 = vld [vmem:[#allocation2] sm:$0xff]
        %v1363 = vld [vmem:[#allocation2 + $0x8] sm:$0xff]
        %v1364 = vld [vmem:[#allocation2 + $0x10] sm:$0xff]
        %v1365 = vld [vmem:[#allocation2 + $0x18] sm:$0xff]
        %v1366 = vld [vmem:[#allocation2 + $0x20] sm:$0xff]
        %v1367 = vld [vmem:[#allocation2 + $0x28] sm:$0xff]
        %v1368 = vld [vmem:[#allocation2 + $0x30] sm:$0xff]
        %v1369 = vld [vmem:[#allocation2 + $0x38] sm:$0xff]
        %v1370 = vld [vmem:[#allocation2 + $0x40] sm:$0xff]
        %v1371 = vld [vmem:[#allocation2 + $0x48] sm:$0xff]
        %v1372 = vld [vmem:[#allocation2 + $0x50] sm:$0xff]
        %v1373 = vld [vmem:[#allocation2 + $0x58] sm:$0xff]
        %v1374 = vld [vmem:[#allocation2 + $0x60] sm:$0xff]
        %v1375 = vld [vmem:[#allocation2 + $0x68] sm:$0xff]
        %v1376 = vld [vmem:[#allocation2 + $0x70] sm:$0xff]
        %v1377 = vld [vmem:[#allocation2 + $0x78] sm:$0xff]
        %v1378 = vld [vmem:[#allocation2 + $0x80] sm:$0xff]
        %v1379 = vld [vmem:[#allocation2 + $0x88] sm:$0xff]
        %v1380 = vld [vmem:[#allocation2 + $0x90] sm:$0xff]
        %v1381 = vld [vmem:[#allocation2 + $0x98] sm:$0xff]
        %v1382 = vld [vmem:[#allocation2 + $0xa0] sm:$0xff]
        %v1383 = vld [vmem:[#allocation2 + $0xa8] sm:$0xff]
        %v1384 = vld [vmem:[#allocation2 + $0xb0] sm:$0xff]
        %v1385 = vld [vmem:[#allocation2 + $0xb8] sm:$0xff]
        %v1388 = vunpack.c.l.b16 %v1360
        %v1389 = vunpack.c.h.b16 %v1360
        %v1390 = vunpack.c.l.b16 %v1361
        %v1391 = vpack.c.b16 %v1388, %v1388
        %v1392 = vpack.c.b16 %v1389, %v1389
        %v1393 = vpack.c.b16 %v1390, %v1390
        %1397 = vmatprep.subr.bf16.mxu0 0
        %1398 = vmatpush1.bf16.msra.mxu0 %v1362
        %1399 = vmatprep.subr.bf16.mxu0 0
        %1400 = vmatpush1.bf16.msra.mxu0 %v1363
        %1401 = vmatprep.subr.bf16.mxu0 0
        %1402 = vmatpush1.bf16.msra.mxu0 %v1364
        %1403 = vmatprep.subr.bf16.mxu0 0
        %1404 = vmatpush1.bf16.msra.mxu0 %v1365
        %1405 = vmatprep.subr.bf16.mxu0 0
        %1406 = vmatpush1.bf16.msra.mxu0 %v1366
        %1407 = vmatprep.subr.bf16.mxu0 0
        %1408 = vmatpush1.bf16.msra.mxu0 %v1367
        %1409 = vmatprep.subr.bf16.mxu0 0
        %1410 = vmatpush1.bf16.msra.mxu0 %v1368
        %1411 = vmatprep.subr.bf16.mxu0 0
        %1412 = vmatpush1.bf16.msra.mxu0 %v1369
        %1413 = vmatprep.subr.bf16.mxu0 0
        %1414 = vmatpush1.bf16.msra.mxu0 %v1370
        %1415 = vmatprep.subr.bf16.mxu0 0
        %1416 = vmatpush1.bf16.msra.mxu0 %v1371
        %1417 = vmatprep.subr.bf16.mxu0 0
        %1418 = vmatpush1.bf16.msra.mxu0 %v1372
        %1419 = vmatprep.subr.bf16.mxu0 0
        %1420 = vmatpush1.bf16.msra.mxu0 %v1373
        %1421 = vmatprep.subr.bf16.mxu0 0
        %1422 = vmatpush1.bf16.msra.mxu0 %v1374
        %1423 = vmatprep.subr.bf16.mxu0 0
        %1424 = vmatpush1.bf16.msra.mxu0 %v1375
        %1425 = vmatprep.subr.bf16.mxu0 0
        %1426 = vmatpush1.bf16.msra.mxu0 %v1376
        %1427 = vmatprep.subr.bf16.mxu0 0
        %1428 = vmatpush1.bf16.msra.mxu0 %v1377
        %1429 = vmatprep.mubr.bf16.mxu0 %v1392
        %1430 = vmatmul.mubr.bf16.gmra.mrb[0].mxu0 %v1391
        %v1431 = vpop.f32.mrb[0].mxu0
        %v1432 = vadd.f32 0.0, %v1431
        %v1433 = vpop.f32.mrb[0].mxu0
        %v1434 = vpop.f32.mrb[0].mxu0
        %v1435 = vpop.f32.mrb[0].mxu0
        %1436 = vdwg.mxu0
        %1437 = vmatprep.subr.bf16.mxu0 0
        %1438 = vmatpush1.bf16.msra.mxu0 %v1378
        %1439 = vmatprep.subr.bf16.mxu0 0
        %1440 = vmatpush1.bf16.msra.mxu0 %v1379
        %1441 = vmatprep.subr.bf16.mxu0 0
        %1442 = vmatpush1.bf16.msra.mxu0 %v1380
        %1443 = vmatprep.subr.bf16.mxu0 0
        %1444 = vmatpush1.bf16.msra.mxu0 %v1381
        %1445 = vmatprep.subr.bf16.mxu0 0
        %1446 = vmatpush1.bf16.msra.mxu0 %v1382
        %1447 = vmatprep.subr.bf16.mxu0 0
        %1448 = vmatpush1.bf16.msra.mxu0 %v1383
        %1449 = vmatprep.subr.bf16.mxu0 0
        %1450 = vmatpush1.bf16.msra.mxu0 %v1384
        %1451 = vmatprep.subr.bf16.mxu0 0
        %1452 = vmatpush1.bf16.msra.mxu0 %v1385
        %1453 = vmatprep.subr.bf16.mxu0 0
        %1454 = vmatpush1.bf16.msra.mxu0 0
        %1455 = vmatprep.subr.bf16.mxu0 0
        %1456 = vmatpush1.bf16.msra.mxu0 0
        %1457 = vmatprep.subr.bf16.mxu0 0
        %1458 = vmatpush1.bf16.msra.mxu0 0
        %1459 = vmatprep.subr.bf16.mxu0 0
        %1460 = vmatpush1.bf16.msra.mxu0 0
        %1461 = vmatprep.subr.bf16.mxu0 0
        %1462 = vmatpush1.bf16.msra.mxu0 0
        %1463 = vmatprep.subr.bf16.mxu0 0
        %1464 = vmatpush1.bf16.msra.mxu0 0
        %1465 = vmatprep.subr.bf16.mxu0 0
        %1466 = vmatpush1.bf16.msra.mxu0 0
        %1467 = vmatprep.subr.bf16.mxu0 0
        %1468 = vmatpush1.bf16.msra.mxu0 0
        %1469 = vmatprep.mubr.bf16.mxu0 0
        %1470 = vmatmul.mubr.bf16.gmra.mrb[0].mxu0 %v1393
        %v1471 = vpop.f32.mrb[0].mxu0
        %v1472 = vadd.f32 %v1432, %v1471
        %v1473 = vpop.f32.mrb[0].mxu0
        %v1474 = vpop.f32.mrb[0].mxu0
        %v1475 = vpop.f32.mrb[0].mxu0
        %1476 = vdwg.mxu0
        %v1477 = vadd.f32 %v1355, %v1472
        %v1478 = vtanh.pop %v1477
        %1479 = vst [vmem:[%s257 + $0x70] sm:$0xff] %v1478
        %s1480 = sand.u32 %s145, 1
        %s1481 = scalar_lea.sflag [#allocation5], %s1480
        %s1482 = sand.u32 %s145, 1
        %s1483 = smul.addr %s1482, 128
        %s1484 = scalar_lea.vmem [#allocation6], %s1483
        // Predicated region
        $region45: #{tpu_custom_call.1} parent=39 // pred_check
          %p1485 = pneg %p155
        $region46: #{tpu_custom_call.1} parent=39 // pred_check_branch
          %1487 = sbr.rel (%p1485) target = $region48
        $region47: #{tpu_custom_call.1} parent=39 // pred_region
          %s1489 = ssub.s32 2048, 2048
          %1490 = vsyncadd %s1481, %s1489
          %s1491 = smul.addr %s22, 16
          %s1492 = smul.addr %s1491, 128
          %s1493 = scalar_lea.hbm %s5, %s1492
          %s1494 = sshll.u32 %s1484, 4
          %s1495 = int_to_ptr.vmem [resolvable:$true] %s1494
          %1500 = dma.vmem_to_hbm [thread:$0]  %s1495, 2048, %s1493, %s1481, 128, 128, 8
        $region48: #{tpu_custom_call.1} parent=39 // pred_fallthru
          _
      $region40: #{tpu_custom_call.1} parent=5 // pred_fallthru
        _
      %p1501 = scmp.le.s32.totalorder 2, %s17
      // Predicated region
      $region49: #{tpu_custom_call.1} parent=5 // pred_check
        %p1502 = pneg %p1501
      $region50: #{tpu_custom_call.1} parent=5 // pred_check_branch
        %1504 = sbr.rel (%p1502) target = $region52
      $region51: #{tpu_custom_call.1} parent=5 // pred_region
        %s1505 = ssub.s32 %s17, 2
        // Predicated region
        $region53: #{tpu_custom_call.1} parent=51 // pred_check
          %p1506 = pneg %p161
        $region54: #{tpu_custom_call.1} parent=51 // pred_check_branch
          %1508 = sbr.rel (%p1506) target = $region56
        $region55: #{tpu_custom_call.1} parent=51 // pred_region
          %s1509 = sand.u32 %s146, 1
          %s1510 = scalar_lea.sflag [#allocation5], %s1509
          %s1511 = sand.u32 %s146, 1
          %s1512 = smul.addr %s1511, 128
          %s1513 = scalar_lea.vmem [#allocation6], %s1512
          %1514 = dma.done %s1510, 2048
        $region56: #{tpu_custom_call.1} parent=51 // pred_fallthru
          _
      $region52: #{tpu_custom_call.1} parent=5 // pred_fallthru
        _
    $region6: #{tpu_custom_call.1} parent=1 // loop_footer
      %s21 = sadd.s32 1, %s17
    $region7: #{tpu_custom_call.1} parent=1 // loop_footer_branch
      %16 = sbr.rel target = $region3
    $region8: #{tpu_custom_call.1} parent=1 // loop_exit
      _
    %1515 = vsyncpa [#allocation4], 1
    %s1516 = scalar_lea.sflag [#allocation4], 1
    %1517 = vsyncpa %s1516, 1
    %1518 = vsyncpa [#allocation5], 1
    %s1519 = scalar_lea.sflag [#allocation5], 1
    %1520 = vsyncpa %s1519, 1

</llo_original>
